<compile_context>
chip_gen: v7x
topology: tpu7x:2x2x1
jax: 0.10.0
libtpu: 0.0.40
codegen_flags: <defaults>
</compile_context>

<pallas_src>
import functools

import jax
import jax.numpy as jnp
from jax.experimental import pallas as pl
from jax.experimental.pallas import tpu as pltpu

BN_EPS = 1e-5


def _round_up(x, m):
    return (x + m - 1) // m * m


# Generation-aware VMEM budget: half of physical VMEM, capped at 64 MiB
# (=> 32 MiB on v7x's 64 MiB parts, 64 MiB on v5e/v6e's 128 MiB parts).
try:
    _VMEM_LIMIT = min(pltpu.get_tpu_info().vmem_capacity_bytes // 2, 64 * 1024 * 1024)
except Exception:  # conservative fallback if the query is unavailable
    _VMEM_LIMIT = 32 * 1024 * 1024


def _conv_taps(x_ref, w_ref, *, kh, kw, wp, l_out):
    """Fused-im2col conv: sum of KH*KW per-tap MXU matmuls on shifted lane views.

    x_ref: [Cin, Lp]       one zero-padded image, spatial dims flattened
                           (Lp >= l_out + max tap offset, tail is zeros)
    w_ref: [KH*KW, Cp, Cin] per-tap weights
    Returns y [Cp, l_out] (f32 accumulation).  Valid conv outputs live at flat
    position r*Wp + c for r < H, c < W; other positions are discarded/masked later.
    """
    xf = x_ref[...]
    acc = None
    for di in range(kh):
        for dj in range(kw):
            d = di * wp + dj
            z = xf[:, d:d + l_out]                       # static lane-offset slice (halo view)
            part = jnp.dot(w_ref[di * kw + dj], z,
                           preferred_element_type=jnp.float32)
            acc = part if acc is None else acc + part
    return acc


def _conv_stats_kernel(x_ref, w_ref, mask_ref, sum_ref, ssq_ref, *, kh, kw, wp, l_out):
    """Pass 1: conv + per-channel sum / sum-of-squares (per-core partial accumulators).

    mask_ref [1, l_out] zeroes the padded/invalid spatial positions so the batch
    statistics are exact.  Reductions use the XLU (jnp.sum), not the MXU.
    """
    @pl.when(pl.program_id(1) == 0)
    def _():
        sum_ref[...] = jnp.zeros_like(sum_ref)
        ssq_ref[...] = jnp.zeros_like(ssq_ref)

    y = _conv_taps(x_ref, w_ref, kh=kh, kw=kw, wp=wp, l_out=l_out)   # [Cp, l_out] f32
    ym = y * mask_ref[...]
    sum_ref[...] += jnp.sum(ym, axis=-1, keepdims=True)
    ssq_ref[...] += jnp.sum(ym * ym, axis=-1, keepdims=True)


def _conv_bn_mish_kernel(x_ref, w_ref, scale_ref, shift_ref, o_ref, *, kh, kw, wp, l_out):
    """Pass 2: conv recomputed + BN as one per-channel FMA + single-exp Mish (f32 math)."""
    y = _conv_taps(x_ref, w_ref, kh=kh, kw=kw, wp=wp, l_out=l_out)   # [Cp, l_out] f32
    z = y * scale_ref[...] + shift_ref[...]
    # Mish: z * tanh(softplus(z)) = z * (e^2 + 2e) / (e^2 + 2e + 2), e = exp(z).
    # Clamp at 20 (result saturates to z well before that), avoids inf/inf.
    e = jnp.exp(jnp.minimum(z, 20.0))
    num = e * (e + 2.0)
    # Exact reciprocal: approx=True's ~1e-4 error is visible against the f32 reference.
    o_ref[...] = (z * num * pl.reciprocal(num + 2.0, approx=False)).astype(o_ref.dtype)


@functools.partial(jax.jit, static_argnames=("size", "compute_dtype", "out_dtype"))
def conv_bn_mish(x_nchw, conv_w, conv_b, bn_gamma, bn_beta, *, size,
                 compute_dtype=jnp.bfloat16, out_dtype=jnp.float32):
    """ConvBN forward. x_nchw: [N, Cin, H, W] (PyTorch convention)."""
    # Train-mode BatchNorm subtracts the batch mean, which cancels the conv bias
    # exactly -> the bias never needs to be loaded or added.
    del conv_b

    kh, kw = size
    assert kh % 2 == 1 and kw % 2 == 1, "same-size output path assumes odd kernel sizes"
    ph, pw = (kh - 1) // 2, (kw - 1) // 2
    n, cin, h, w = x_nchw.shape
    cout = conv_w.shape[0]

    hp, wp = h + 2 * ph, w + 2 * pw
    l_out = hp * wp                 # per-image flattened (padded-layout) output length
    lp = (hp + kh) * wp             # input length incl. zero tail so every tap slice fits
    cp = _round_up(cout, 8)         # sublane-pad Cout

    # Shard pass-1 stats over a leading size-2 "parallel" grid axis (both v7x TCs issue
    # DMA); harmless single-core overhead elsewhere.
    nc = 2 if n >= 2 else 1
    n_pad = _round_up(n, nc)
    per_core = n_pad // nc

    # ---- glue: ONE zero-pad (batch pad + conv halo + tap tail), built in compute dtype.
    x_pad = jnp.pad(x_nchw.astype(compute_dtype),
                    ((0, n_pad - n), (0, 0), (ph, ph + kh), (pw, pw)))
    x_flat = x_pad.reshape(n_pad, cin, lp)                     # [N_pad, Cin, Lp]

    # conv_w: [Cout, Cin, KH, KW] -> per-tap [KH*KW, Cp, Cin]
    w_taps = jnp.transpose(conv_w, (2, 3, 0, 1)).reshape(kh * kw, cout, cin)
    w_taps = jnp.pad(w_taps, ((0, 0), (0, cp - cout), (0, 0))).astype(compute_dtype)

    # Validity mask over the padded flat output positions (f32 so stats stay exact).
    idx = jnp.arange(l_out, dtype=jnp.int32)
    mask = (((idx % wp) < w) & (idx < h * wp)).astype(jnp.float32).reshape(1, l_out)

    # ---- pass 1: global per-channel sum / sum-of-squares (per-core partials) --------
    stats_kernel = functools.partial(_conv_stats_kernel, kh=kh, kw=kw, wp=wp, l_out=l_out)
    sums_c, ssqs_c = pl.pallas_call(
        stats_kernel,
        out_shape=(jax.ShapeDtypeStruct((nc, cp, 1), jnp.float32),
                   jax.ShapeDtypeStruct((nc, cp, 1), jnp.float32)),
        grid=(nc, per_core),
        in_specs=[pl.BlockSpec((None, cin, lp), lambda c, i: (c * per_core + i, 0, 0)),
                  pl.BlockSpec((kh * kw, cp, cin), lambda c, i: (0, 0, 0)),
                  pl.BlockSpec((1, l_out), lambda c, i: (0, 0))],
        out_specs=(pl.BlockSpec((None, cp, 1), lambda c, i: (c, 0, 0)),
                   pl.BlockSpec((None, cp, 1), lambda c, i: (c, 0, 0))),
        compiler_params=pltpu.CompilerParams(
            dimension_semantics=("parallel", "arbitrary"),
            vmem_limit_bytes=_VMEM_LIMIT),
    )(x_flat, w_taps, mask)

    # ---- tiny per-channel BN math between passes (plain JAX, f32) -------------------
    m = jnp.float32(n * h * w)
    sums = jnp.sum(sums_c, axis=0)[:, 0]
    ssqs = jnp.sum(ssqs_c, axis=0)[:, 0]
    mean = sums / m
    # NOTE: E[x^2]-mean^2 in f32; fine at these scales (clamped), a shifted/Welford
    # combine would be needed only for very large batches with large per-channel means.
    var = jnp.maximum(ssqs / m - mean * mean, 0.0)             # biased (train-mode) variance
    gamma_p = jnp.pad(bn_gamma.astype(jnp.float32), (0, cp - cout))
    beta_p = jnp.pad(bn_beta.astype(jnp.float32), (0, cp - cout))
    scale_v = gamma_p * jax.lax.rsqrt(var + BN_EPS)
    shift_v = beta_p - mean * scale_v
    scale = scale_v.reshape(cp, 1)
    shift = shift_v.reshape(cp, 1)

    # ---- pass 2: conv recomputed (fused input re-read: Cin rows < 2*Cp rows a y-spill
    # would cost) + BN FMA + Mish, lane-dense [Cp, Hp*Wp] store, no transpose ----------
    apply_kernel = functools.partial(_conv_bn_mish_kernel, kh=kh, kw=kw, wp=wp, l_out=l_out)
    out_t = pl.pallas_call(
        apply_kernel,
        out_shape=jax.ShapeDtypeStruct((n_pad, cp, l_out), out_dtype),
        grid=(n_pad,),
        in_specs=[pl.BlockSpec((None, cin, lp), lambda i: (i, 0, 0)),
                  pl.BlockSpec((kh * kw, cp, cin), lambda i: (0, 0, 0)),
                  pl.BlockSpec((cp, 1), lambda i: (0, 0)),
                  pl.BlockSpec((cp, 1), lambda i: (0, 0))],
        out_specs=pl.BlockSpec((None, cp, l_out), lambda i: (i, 0, 0)),
        compiler_params=pltpu.CompilerParams(
            dimension_semantics=("parallel",),
            vmem_limit_bytes=_VMEM_LIMIT),
    )(x_flat, w_taps, scale, shift)

    # [N_pad, Cp, Hp*Wp] -> NCHW via reshape + slice only (no jnp.transpose round trip).
    out = out_t[:n, :cout, :].reshape(n, cout, hp, wp)[:, :, :h, :w]
    return out


def _reference(x_nchw, conv_w, conv_b, bn_gamma, bn_beta, size):
    """Pure-JAX reference for correctness checking."""
    kh, kw = size
    ph, pw = (kh - 1) // 2, (kw - 1) // 2
    y = jax.lax.conv_general_dilated(
        x_nchw.astype(jnp.float32), conv_w.astype(jnp.float32),
        window_strides=(1, 1), padding=((ph, ph), (pw, pw)),
        dimension_numbers=("NCHW", "OIHW", "NCHW"))
    y = y + conv_b.reshape(1, -1, 1, 1)
    mean = jnp.mean(y, axis=(0, 2, 3), keepdims=True)
    var = jnp.mean((y - mean) ** 2, axis=(0, 2, 3), keepdims=True)
    z = (y - mean) * jax.lax.rsqrt(var + BN_EPS)
    z = z * bn_gamma.reshape(1, -1, 1, 1) + bn_beta.reshape(1, -1, 1, 1)
    return z * jnp.tanh(jax.nn.softplus(z))


if __name__ == "__main__":
    # Small shapes consistent with ConvBN(in_c=4, out_c=8, size=(3, 3)).
    N, CIN, COUT, H, W = 2, 4, 8, 16, 16
    SIZE = (3, 3)

    key = jax.random.PRNGKey(0)
    kx, kw_, kb = jax.random.split(key, 3)
    x = jax.random.normal(kx, (N, CIN, H, W), dtype=jnp.float32)
    # Deterministic synthetic parameters (Conv2d weight/bias; BN gamma=1, beta=0).
    fan_in = CIN * SIZE[0] * SIZE[1]
    bound = 1.0 / float(fan_in) ** 0.5
    conv_w = jax.random.uniform(kw_, (COUT, CIN, SIZE[0], SIZE[1]),
                                minval=-bound, maxval=bound, dtype=jnp.float32)
    conv_b = jax.random.uniform(kb, (COUT,), minval=-bound, maxval=bound,
                                dtype=jnp.float32)
    bn_gamma = jnp.ones((COUT,), jnp.float32)
    bn_beta = jnp.zeros((COUT,), jnp.float32)

    ref = _reference(x, conv_w, conv_b, bn_gamma, bn_beta, SIZE)

    # Default path: bf16 matmul inputs (halved HBM bytes), f32 accumulation / BN / Mish.
    # Batch statistics are computed from the bf16-rounded conv (self-consistent between
    # the two passes), so compare at a bf16-appropriate tolerance.
    out_bf16 = conv_bn_mish(x, conv_w, conv_b, bn_gamma, bn_beta, size=SIZE)
    out_bf16 = jax.block_until_ready(out_bf16)
    assert out_bf16.shape == (N, COUT, H, W)
    assert jnp.allclose(out_bf16, ref, atol=3e-2, rtol=3e-2)

    # Full-f32 path, checked tight against the reference.
    out_f32 = conv_bn_mish(x, conv_w, conv_b, bn_gamma, bn_beta, size=SIZE,
                           compute_dtype=jnp.float32)
    out_f32 = jax.block_until_ready(out_f32)
    assert out_f32.shape == (N, COUT, H, W)
    assert jnp.allclose(out_f32, ref, atol=1e-4, rtol=1e-4)

    print("KERNEL_OK")
</pallas_src>

<mosaic_0001>
module attributes {stable_mosaic.version = 11 : i64} {
  func.func @_conv_stats_kernel(%arg0: i32, %arg1: i32, %arg2: memref<1x4x378xbf16, #tpu.memory_space<vmem>>, %arg3: memref<9x8x4xbf16, #tpu.memory_space<vmem>>, %arg4: memref<1x324xf32, #tpu.memory_space<vmem>>, %arg5: memref<1x8x1xf32, #tpu.memory_space<vmem>>, %arg6: memref<1x8x1xf32, #tpu.memory_space<vmem>>) attributes {dimension_semantics = [#tpu.dimension_semantics<parallel>, #tpu.dimension_semantics<arbitrary>], iteration_bounds = array<i64: 2, 1>, scalar_prefetch = 0 : i64, scratch_operands = 0 : i64, tpu.core_type = #tpu.core_type<tc>, window_params = [{transform_indices = @transform_0, window_bounds = array<i64: 1, 4, 378>}, {pipeline_mode = #tpu.pipeline_mode<synchronous>, transform_indices = @transform_1, window_bounds = array<i64: 9, 8, 4>}, {pipeline_mode = #tpu.pipeline_mode<synchronous>, transform_indices = @transform_2, window_bounds = array<i64: 1, 324>}, {transform_indices = @transform_3, window_bounds = array<i64: 1, 8, 1>}, {transform_indices = @transform_4, window_bounds = array<i64: 1, 8, 1>}]} {
    %c0_i32 = arith.constant 0 : i32
    %0 = arith.cmpi eq, %arg1, %c0_i32 : i32
    %1 = arith.extui %0 : i1 to i32
    %c0_i32_0 = arith.constant 0 : i32
    %2 = arith.cmpi ne, %1, %c0_i32_0 : i32
    scf.if %2 {
      %cst_46 = arith.constant 0.000000e+00 : f32
      %69 = vector.broadcast %cst_46 : f32 to vector<8x1xf32>
      %c0_47 = arith.constant 0 : index
      %c0_48 = arith.constant 0 : index
      %c0_49 = arith.constant 0 : index
      %70 = vector.load %arg5[%c0_47, %c0_48, %c0_49] : memref<1x8x1xf32, #tpu.memory_space<vmem>>, vector<1x8x1xf32>
      %71 = vector.shape_cast %70 : vector<1x8x1xf32> to vector<8x1xf32>
      %72 = vector.shape_cast %69 : vector<8x1xf32> to vector<1x8x1xf32>
      tpu.vector_store %arg5[%c0_47, %c0_48, %c0_49], %72 {strides = array<i32>} : memref<1x8x1xf32, #tpu.memory_space<vmem>>, vector<1x8x1xf32>,
      %cst_50 = arith.constant 0.000000e+00 : f32
      %73 = vector.broadcast %cst_50 : f32 to vector<8x1xf32>
      %c0_51 = arith.constant 0 : index
      %c0_52 = arith.constant 0 : index
      %c0_53 = arith.constant 0 : index
      %74 = vector.load %arg6[%c0_51, %c0_52, %c0_53] : memref<1x8x1xf32, #tpu.memory_space<vmem>>, vector<1x8x1xf32>
      %75 = vector.shape_cast %74 : vector<1x8x1xf32> to vector<8x1xf32>
      %76 = vector.shape_cast %73 : vector<8x1xf32> to vector<1x8x1xf32>
      tpu.vector_store %arg6[%c0_51, %c0_52, %c0_53], %76 {strides = array<i32>} : memref<1x8x1xf32, #tpu.memory_space<vmem>>, vector<1x8x1xf32>,
    } else {
    }
    %c0 = arith.constant 0 : index
    %c0_1 = arith.constant 0 : index
    %c0_2 = arith.constant 0 : index
    %3 = vector.load %arg2[%c0, %c0_1, %c0_2] : memref<1x4x378xbf16, #tpu.memory_space<vmem>>, vector<1x4x378xbf16>
    %4 = vector.shape_cast %3 : vector<1x4x378xbf16> to vector<4x378xbf16>
    %5 = vector.extract_strided_slice %4 {offsets = [0, 0], sizes = [4, 324], strides = [1, 1]} : vector<4x378xbf16> to vector<4x324xbf16>
    %c0_3 = arith.constant 0 : index
    %c0_4 = arith.constant 0 : index
    %c0_5 = arith.constant 0 : index
    %6 = vector.load %arg3[%c0_3, %c0_4, %c0_5] : memref<9x8x4xbf16, #tpu.memory_space<vmem>>, vector<1x8x4xbf16>
    %7 = vector.shape_cast %6 : vector<1x8x4xbf16> to vector<8x4xbf16>
    %cst = arith.constant dense<0.000000e+00> : vector<8x324xf32>
    %8 = tpu.matmul %7, %5, %cst {dimension_numbers = #tpu.dot_dimension_numbers<[1], [0], [0], [1], [0, 0, 1, 1], [], []>} : vector<8x4xbf16>, vector<4x324xbf16>, vector<8x324xf32> -> vector<8x324xf32>
    %9 = vector.extract_strided_slice %4 {offsets = [0, 1], sizes = [4, 324], strides = [1, 1]} : vector<4x378xbf16> to vector<4x324xbf16>
    %c1 = arith.constant 1 : index
    %c0_6 = arith.constant 0 : index
    %c0_7 = arith.constant 0 : index
    %10 = vector.load %arg3[%c1, %c0_6, %c0_7] : memref<9x8x4xbf16, #tpu.memory_space<vmem>>, vector<1x8x4xbf16>
    %11 = vector.shape_cast %10 : vector<1x8x4xbf16> to vector<8x4xbf16>
    %cst_8 = arith.constant dense<0.000000e+00> : vector<8x324xf32>
    %12 = tpu.matmul %11, %9, %cst_8 {dimension_numbers = #tpu.dot_dimension_numbers<[1], [0], [0], [1], [0, 0, 1, 1], [], []>} : vector<8x4xbf16>, vector<4x324xbf16>, vector<8x324xf32> -> vector<8x324xf32>
    %13 = arith.addf %8, %12 : vector<8x324xf32>
    %14 = vector.extract_strided_slice %4 {offsets = [0, 2], sizes = [4, 324], strides = [1, 1]} : vector<4x378xbf16> to vector<4x324xbf16>
    %c2 = arith.constant 2 : index
    %c0_9 = arith.constant 0 : index
    %c0_10 = arith.constant 0 : index
    %15 = vector.load %arg3[%c2, %c0_9, %c0_10] : memref<9x8x4xbf16, #tpu.memory_space<vmem>>, vector<1x8x4xbf16>
    %16 = vector.shape_cast %15 : vector<1x8x4xbf16> to vector<8x4xbf16>
    %cst_11 = arith.constant dense<0.000000e+00> : vector<8x324xf32>
    %17 = tpu.matmul %16, %14, %cst_11 {dimension_numbers = #tpu.dot_dimension_numbers<[1], [0], [0], [1], [0, 0, 1, 1], [], []>} : vector<8x4xbf16>, vector<4x324xbf16>, vector<8x324xf32> -> vector<8x324xf32>
    %18 = arith.addf %13, %17 : vector<8x324xf32>
    %19 = vector.extract_strided_slice %4 {offsets = [0, 18], sizes = [4, 324], strides = [1, 1]} : vector<4x378xbf16> to vector<4x324xbf16>
    %c3 = arith.constant 3 : index
    %c0_12 = arith.constant 0 : index
    %c0_13 = arith.constant 0 : index
    %20 = vector.load %arg3[%c3, %c0_12, %c0_13] : memref<9x8x4xbf16, #tpu.memory_space<vmem>>, vector<1x8x4xbf16>
    %21 = vector.shape_cast %20 : vector<1x8x4xbf16> to vector<8x4xbf16>
    %cst_14 = arith.constant dense<0.000000e+00> : vector<8x324xf32>
    %22 = tpu.matmul %21, %19, %cst_14 {dimension_numbers = #tpu.dot_dimension_numbers<[1], [0], [0], [1], [0, 0, 1, 1], [], []>} : vector<8x4xbf16>, vector<4x324xbf16>, vector<8x324xf32> -> vector<8x324xf32>
    %23 = arith.addf %18, %22 : vector<8x324xf32>
    %24 = vector.extract_strided_slice %4 {offsets = [0, 19], sizes = [4, 324], strides = [1, 1]} : vector<4x378xbf16> to vector<4x324xbf16>
    %c4 = arith.constant 4 : index
    %c0_15 = arith.constant 0 : index
    %c0_16 = arith.constant 0 : index
    %25 = vector.load %arg3[%c4, %c0_15, %c0_16] : memref<9x8x4xbf16, #tpu.memory_space<vmem>>, vector<1x8x4xbf16>
    %26 = vector.shape_cast %25 : vector<1x8x4xbf16> to vector<8x4xbf16>
    %cst_17 = arith.constant dense<0.000000e+00> : vector<8x324xf32>
    %27 = tpu.matmul %26, %24, %cst_17 {dimension_numbers = #tpu.dot_dimension_numbers<[1], [0], [0], [1], [0, 0, 1, 1], [], []>} : vector<8x4xbf16>, vector<4x324xbf16>, vector<8x324xf32> -> vector<8x324xf32>
    %28 = arith.addf %23, %27 : vector<8x324xf32>
    %29 = vector.extract_strided_slice %4 {offsets = [0, 20], sizes = [4, 324], strides = [1, 1]} : vector<4x378xbf16> to vector<4x324xbf16>
    %c5 = arith.constant 5 : index
    %c0_18 = arith.constant 0 : index
    %c0_19 = arith.constant 0 : index
    %30 = vector.load %arg3[%c5, %c0_18, %c0_19] : memref<9x8x4xbf16, #tpu.memory_space<vmem>>, vector<1x8x4xbf16>
    %31 = vector.shape_cast %30 : vector<1x8x4xbf16> to vector<8x4xbf16>
    %cst_20 = arith.constant dense<0.000000e+00> : vector<8x324xf32>
    %32 = tpu.matmul %31, %29, %cst_20 {dimension_numbers = #tpu.dot_dimension_numbers<[1], [0], [0], [1], [0, 0, 1, 1], [], []>} : vector<8x4xbf16>, vector<4x324xbf16>, vector<8x324xf32> -> vector<8x324xf32>
    %33 = arith.addf %28, %32 : vector<8x324xf32>
    %34 = vector.extract_strided_slice %4 {offsets = [0, 36], sizes = [4, 324], strides = [1, 1]} : vector<4x378xbf16> to vector<4x324xbf16>
    %c6 = arith.constant 6 : index
    %c0_21 = arith.constant 0 : index
    %c0_22 = arith.constant 0 : index
    %35 = vector.load %arg3[%c6, %c0_21, %c0_22] : memref<9x8x4xbf16, #tpu.memory_space<vmem>>, vector<1x8x4xbf16>
    %36 = vector.shape_cast %35 : vector<1x8x4xbf16> to vector<8x4xbf16>
    %cst_23 = arith.constant dense<0.000000e+00> : vector<8x324xf32>
    %37 = tpu.matmul %36, %34, %cst_23 {dimension_numbers = #tpu.dot_dimension_numbers<[1], [0], [0], [1], [0, 0, 1, 1], [], []>} : vector<8x4xbf16>, vector<4x324xbf16>, vector<8x324xf32> -> vector<8x324xf32>
    %38 = arith.addf %33, %37 : vector<8x324xf32>
    %39 = vector.extract_strided_slice %4 {offsets = [0, 37], sizes = [4, 324], strides = [1, 1]} : vector<4x378xbf16> to vector<4x324xbf16>
    %c7 = arith.constant 7 : index
    %c0_24 = arith.constant 0 : index
    %c0_25 = arith.constant 0 : index
    %40 = vector.load %arg3[%c7, %c0_24, %c0_25] : memref<9x8x4xbf16, #tpu.memory_space<vmem>>, vector<1x8x4xbf16>
    %41 = vector.shape_cast %40 : vector<1x8x4xbf16> to vector<8x4xbf16>
    %cst_26 = arith.constant dense<0.000000e+00> : vector<8x324xf32>
    %42 = tpu.matmul %41, %39, %cst_26 {dimension_numbers = #tpu.dot_dimension_numbers<[1], [0], [0], [1], [0, 0, 1, 1], [], []>} : vector<8x4xbf16>, vector<4x324xbf16>, vector<8x324xf32> -> vector<8x324xf32>
    %43 = arith.addf %38, %42 : vector<8x324xf32>
    %44 = vector.extract_strided_slice %4 {offsets = [0, 38], sizes = [4, 324], strides = [1, 1]} : vector<4x378xbf16> to vector<4x324xbf16>
    %c8 = arith.constant 8 : index
    %c0_27 = arith.constant 0 : index
    %c0_28 = arith.constant 0 : index
    %45 = vector.load %arg3[%c8, %c0_27, %c0_28] : memref<9x8x4xbf16, #tpu.memory_space<vmem>>, vector<1x8x4xbf16>
    %46 = vector.shape_cast %45 : vector<1x8x4xbf16> to vector<8x4xbf16>
    %cst_29 = arith.constant dense<0.000000e+00> : vector<8x324xf32>
    %47 = tpu.matmul %46, %44, %cst_29 {dimension_numbers = #tpu.dot_dimension_numbers<[1], [0], [0], [1], [0, 0, 1, 1], [], []>} : vector<8x4xbf16>, vector<4x324xbf16>, vector<8x324xf32> -> vector<8x324xf32>
    %48 = arith.addf %43, %47 : vector<8x324xf32>
    %c0_30 = arith.constant 0 : index
    %c0_31 = arith.constant 0 : index
    %49 = vector.load %arg4[%c0_30, %c0_31] : memref<1x324xf32, #tpu.memory_space<vmem>>, vector<1x324xf32>
    %50 = vector.broadcast %49 : vector<1x324xf32> to vector<8x324xf32>
    %51 = arith.mulf %48, %50 : vector<8x324xf32>
    %c0_32 = arith.constant 0 : index
    %c0_33 = arith.constant 0 : index
    %c0_34 = arith.constant 0 : index
    %52 = vector.load %arg5[%c0_32, %c0_33, %c0_34] : memref<1x8x1xf32, #tpu.memory_space<vmem>>, vector<1x8x1xf32>
    %53 = vector.shape_cast %52 : vector<1x8x1xf32> to vector<8x1xf32>
    %cst_35 = arith.constant dense<0.000000e+00> : vector<8xf32>
    %54 = vector.multi_reduction <add>, %51, %cst_35 [1] : vector<8x324xf32> to vector<8xf32>
    %55 = vector.shape_cast %54 : vector<8xf32> to vector<8x1xf32>
    %56 = arith.addf %53, %55 : vector<8x1xf32>
    %c0_36 = arith.constant 0 : index
    %c0_37 = arith.constant 0 : index
    %c0_38 = arith.constant 0 : index
    %57 = vector.load %arg5[%c0_36, %c0_37, %c0_38] : memref<1x8x1xf32, #tpu.memory_space<vmem>>, vector<1x8x1xf32>
    %58 = vector.shape_cast %57 : vector<1x8x1xf32> to vector<8x1xf32>
    %59 = vector.shape_cast %56 : vector<8x1xf32> to vector<1x8x1xf32>
    tpu.vector_store %arg5[%c0_36, %c0_37, %c0_38], %59 {strides = array<i32>} : memref<1x8x1xf32, #tpu.memory_space<vmem>>, vector<1x8x1xf32>,
    %c0_39 = arith.constant 0 : index
    %c0_40 = arith.constant 0 : index
    %c0_41 = arith.constant 0 : index
    %60 = vector.load %arg6[%c0_39, %c0_40, %c0_41] : memref<1x8x1xf32, #tpu.memory_space<vmem>>, vector<1x8x1xf32>
    %61 = vector.shape_cast %60 : vector<1x8x1xf32> to vector<8x1xf32>
    %62 = arith.mulf %51, %51 : vector<8x324xf32>
    %cst_42 = arith.constant dense<0.000000e+00> : vector<8xf32>
    %63 = vector.multi_reduction <add>, %62, %cst_42 [1] : vector<8x324xf32> to vector<8xf32>
    %64 = vector.shape_cast %63 : vector<8xf32> to vector<8x1xf32>
    %65 = arith.addf %61, %64 : vector<8x1xf32>
    %c0_43 = arith.constant 0 : index
    %c0_44 = arith.constant 0 : index
    %c0_45 = arith.constant 0 : index
    %66 = vector.load %arg6[%c0_43, %c0_44, %c0_45] : memref<1x8x1xf32, #tpu.memory_space<vmem>>, vector<1x8x1xf32>
    %67 = vector.shape_cast %66 : vector<1x8x1xf32> to vector<8x1xf32>
    %68 = vector.shape_cast %65 : vector<8x1xf32> to vector<1x8x1xf32>
    tpu.vector_store %arg6[%c0_43, %c0_44, %c0_45], %68 {strides = array<i32>} : memref<1x8x1xf32, #tpu.memory_space<vmem>>, vector<1x8x1xf32>,
    return
  }
  func.func @transform_0(%arg0: i32, %arg1: i32) -> (i32, i32, i32) {
    %c1_i32 = arith.constant 1 : i32
    %0 = arith.muli %arg0, %c1_i32 : i32
    %1 = arith.addi %0, %arg1 : i32
    %c0_i32 = arith.constant 0 : i32
    %c0_i32_0 = arith.constant 0 : i32
    %c0_i32_1 = arith.constant 0 : i32
    return %1, %c0_i32, %c0_i32_0 : i32, i32, i32
  }
  func.func @transform_1(%arg0: i32, %arg1: i32) -> (i32, i32, i32) {
    %c0_i32 = arith.constant 0 : i32
    %c0_i32_0 = arith.constant 0 : i32
    %c0_i32_1 = arith.constant 0 : i32
    %c0_i32_2 = arith.constant 0 : i32
    return %c0_i32, %c0_i32_0, %c0_i32_1 : i32, i32, i32
  }
  func.func @transform_2(%arg0: i32, %arg1: i32) -> (i32, i32) {
    %c0_i32 = arith.constant 0 : i32
    %c0_i32_0 = arith.constant 0 : i32
    %c0_i32_1 = arith.constant 0 : i32
    return %c0_i32, %c0_i32_0 : i32, i32
  }
  func.func @transform_3(%arg0: i32, %arg1: i32) -> (i32, i32, i32) {
    %c0_i32 = arith.constant 0 : i32
    %c0_i32_0 = arith.constant 0 : i32
    %c0_i32_1 = arith.constant 0 : i32
    return %arg0, %c0_i32, %c0_i32_0 : i32, i32, i32
  }
  func.func @transform_4(%arg0: i32, %arg1: i32) -> (i32, i32, i32) {
    %c0_i32 = arith.constant 0 : i32
    %c0_i32_0 = arith.constant 0 : i32
    %c0_i32_1 = arith.constant 0 : i32
    return %arg0, %c0_i32, %c0_i32_0 : i32, i32, i32
  }
}

module attributes {stable_mosaic.version = 11 : i64} {
  func.func @_conv_bn_mish_kernel(%arg0: i32, %arg1: memref<1x4x378xbf16, #tpu.memory_space<vmem>>, %arg2: memref<9x8x4xbf16, #tpu.memory_space<vmem>>, %arg3: memref<8x1xf32, #tpu.memory_space<vmem>>, %arg4: memref<8x1xf32, #tpu.memory_space<vmem>>, %arg5: memref<1x8x324xf32, #tpu.memory_space<vmem>>) attributes {dimension_semantics = [#tpu.dimension_semantics<parallel>], iteration_bounds = array<i64: 2>, scalar_prefetch = 0 : i64, scratch_operands = 0 : i64, tpu.core_type = #tpu.core_type<tc>, window_params = [{transform_indices = @transform_0, window_bounds = array<i64: 1, 4, 378>}, {pipeline_mode = #tpu.pipeline_mode<synchronous>, transform_indices = @transform_1, window_bounds = array<i64: 9, 8, 4>}, {pipeline_mode = #tpu.pipeline_mode<synchronous>, transform_indices = @transform_2, window_bounds = array<i64: 8, 1>}, {pipeline_mode = #tpu.pipeline_mode<synchronous>, transform_indices = @transform_3, window_bounds = array<i64: 8, 1>}, {transform_indices = @transform_4, window_bounds = array<i64: 1, 8, 324>}]} {
    %c0 = arith.constant 0 : index
    %c0_0 = arith.constant 0 : index
    %c0_1 = arith.constant 0 : index
    %0 = vector.load %arg1[%c0, %c0_0, %c0_1] : memref<1x4x378xbf16, #tpu.memory_space<vmem>>, vector<1x4x378xbf16>
    %1 = vector.shape_cast %0 : vector<1x4x378xbf16> to vector<4x378xbf16>
    %2 = vector.extract_strided_slice %1 {offsets = [0, 0], sizes = [4, 324], strides = [1, 1]} : vector<4x378xbf16> to vector<4x324xbf16>
    %c0_2 = arith.constant 0 : index
    %c0_3 = arith.constant 0 : index
    %c0_4 = arith.constant 0 : index
    %3 = vector.load %arg2[%c0_2, %c0_3, %c0_4] : memref<9x8x4xbf16, #tpu.memory_space<vmem>>, vector<1x8x4xbf16>
    %4 = vector.shape_cast %3 : vector<1x8x4xbf16> to vector<8x4xbf16>
    %cst = arith.constant dense<0.000000e+00> : vector<8x324xf32>
    %5 = tpu.matmul %4, %2, %cst {dimension_numbers = #tpu.dot_dimension_numbers<[1], [0], [0], [1], [0, 0, 1, 1], [], []>} : vector<8x4xbf16>, vector<4x324xbf16>, vector<8x324xf32> -> vector<8x324xf32>
    %6 = vector.extract_strided_slice %1 {offsets = [0, 1], sizes = [4, 324], strides = [1, 1]} : vector<4x378xbf16> to vector<4x324xbf16>
    %c1 = arith.constant 1 : index
    %c0_5 = arith.constant 0 : index
    %c0_6 = arith.constant 0 : index
    %7 = vector.load %arg2[%c1, %c0_5, %c0_6] : memref<9x8x4xbf16, #tpu.memory_space<vmem>>, vector<1x8x4xbf16>
    %8 = vector.shape_cast %7 : vector<1x8x4xbf16> to vector<8x4xbf16>
    %cst_7 = arith.constant dense<0.000000e+00> : vector<8x324xf32>
    %9 = tpu.matmul %8, %6, %cst_7 {dimension_numbers = #tpu.dot_dimension_numbers<[1], [0], [0], [1], [0, 0, 1, 1], [], []>} : vector<8x4xbf16>, vector<4x324xbf16>, vector<8x324xf32> -> vector<8x324xf32>
    %10 = arith.addf %5, %9 : vector<8x324xf32>
    %11 = vector.extract_strided_slice %1 {offsets = [0, 2], sizes = [4, 324], strides = [1, 1]} : vector<4x378xbf16> to vector<4x324xbf16>
    %c2 = arith.constant 2 : index
    %c0_8 = arith.constant 0 : index
    %c0_9 = arith.constant 0 : index
    %12 = vector.load %arg2[%c2, %c0_8, %c0_9] : memref<9x8x4xbf16, #tpu.memory_space<vmem>>, vector<1x8x4xbf16>
    %13 = vector.shape_cast %12 : vector<1x8x4xbf16> to vector<8x4xbf16>
    %cst_10 = arith.constant dense<0.000000e+00> : vector<8x324xf32>
    %14 = tpu.matmul %13, %11, %cst_10 {dimension_numbers = #tpu.dot_dimension_numbers<[1], [0], [0], [1], [0, 0, 1, 1], [], []>} : vector<8x4xbf16>, vector<4x324xbf16>, vector<8x324xf32> -> vector<8x324xf32>
    %15 = arith.addf %10, %14 : vector<8x324xf32>
    %16 = vector.extract_strided_slice %1 {offsets = [0, 18], sizes = [4, 324], strides = [1, 1]} : vector<4x378xbf16> to vector<4x324xbf16>
    %c3 = arith.constant 3 : index
    %c0_11 = arith.constant 0 : index
    %c0_12 = arith.constant 0 : index
    %17 = vector.load %arg2[%c3, %c0_11, %c0_12] : memref<9x8x4xbf16, #tpu.memory_space<vmem>>, vector<1x8x4xbf16>
    %18 = vector.shape_cast %17 : vector<1x8x4xbf16> to vector<8x4xbf16>
    %cst_13 = arith.constant dense<0.000000e+00> : vector<8x324xf32>
    %19 = tpu.matmul %18, %16, %cst_13 {dimension_numbers = #tpu.dot_dimension_numbers<[1], [0], [0], [1], [0, 0, 1, 1], [], []>} : vector<8x4xbf16>, vector<4x324xbf16>, vector<8x324xf32> -> vector<8x324xf32>
    %20 = arith.addf %15, %19 : vector<8x324xf32>
    %21 = vector.extract_strided_slice %1 {offsets = [0, 19], sizes = [4, 324], strides = [1, 1]} : vector<4x378xbf16> to vector<4x324xbf16>
    %c4 = arith.constant 4 : index
    %c0_14 = arith.constant 0 : index
    %c0_15 = arith.constant 0 : index
    %22 = vector.load %arg2[%c4, %c0_14, %c0_15] : memref<9x8x4xbf16, #tpu.memory_space<vmem>>, vector<1x8x4xbf16>
    %23 = vector.shape_cast %22 : vector<1x8x4xbf16> to vector<8x4xbf16>
    %cst_16 = arith.constant dense<0.000000e+00> : vector<8x324xf32>
    %24 = tpu.matmul %23, %21, %cst_16 {dimension_numbers = #tpu.dot_dimension_numbers<[1], [0], [0], [1], [0, 0, 1, 1], [], []>} : vector<8x4xbf16>, vector<4x324xbf16>, vector<8x324xf32> -> vector<8x324xf32>
    %25 = arith.addf %20, %24 : vector<8x324xf32>
    %26 = vector.extract_strided_slice %1 {offsets = [0, 20], sizes = [4, 324], strides = [1, 1]} : vector<4x378xbf16> to vector<4x324xbf16>
    %c5 = arith.constant 5 : index
    %c0_17 = arith.constant 0 : index
    %c0_18 = arith.constant 0 : index
    %27 = vector.load %arg2[%c5, %c0_17, %c0_18] : memref<9x8x4xbf16, #tpu.memory_space<vmem>>, vector<1x8x4xbf16>
    %28 = vector.shape_cast %27 : vector<1x8x4xbf16> to vector<8x4xbf16>
    %cst_19 = arith.constant dense<0.000000e+00> : vector<8x324xf32>
    %29 = tpu.matmul %28, %26, %cst_19 {dimension_numbers = #tpu.dot_dimension_numbers<[1], [0], [0], [1], [0, 0, 1, 1], [], []>} : vector<8x4xbf16>, vector<4x324xbf16>, vector<8x324xf32> -> vector<8x324xf32>
    %30 = arith.addf %25, %29 : vector<8x324xf32>
    %31 = vector.extract_strided_slice %1 {offsets = [0, 36], sizes = [4, 324], strides = [1, 1]} : vector<4x378xbf16> to vector<4x324xbf16>
    %c6 = arith.constant 6 : index
    %c0_20 = arith.constant 0 : index
    %c0_21 = arith.constant 0 : index
    %32 = vector.load %arg2[%c6, %c0_20, %c0_21] : memref<9x8x4xbf16, #tpu.memory_space<vmem>>, vector<1x8x4xbf16>
    %33 = vector.shape_cast %32 : vector<1x8x4xbf16> to vector<8x4xbf16>
    %cst_22 = arith.constant dense<0.000000e+00> : vector<8x324xf32>
    %34 = tpu.matmul %33, %31, %cst_22 {dimension_numbers = #tpu.dot_dimension_numbers<[1], [0], [0], [1], [0, 0, 1, 1], [], []>} : vector<8x4xbf16>, vector<4x324xbf16>, vector<8x324xf32> -> vector<8x324xf32>
    %35 = arith.addf %30, %34 : vector<8x324xf32>
    %36 = vector.extract_strided_slice %1 {offsets = [0, 37], sizes = [4, 324], strides = [1, 1]} : vector<4x378xbf16> to vector<4x324xbf16>
    %c7 = arith.constant 7 : index
    %c0_23 = arith.constant 0 : index
    %c0_24 = arith.constant 0 : index
    %37 = vector.load %arg2[%c7, %c0_23, %c0_24] : memref<9x8x4xbf16, #tpu.memory_space<vmem>>, vector<1x8x4xbf16>
    %38 = vector.shape_cast %37 : vector<1x8x4xbf16> to vector<8x4xbf16>
    %cst_25 = arith.constant dense<0.000000e+00> : vector<8x324xf32>
    %39 = tpu.matmul %38, %36, %cst_25 {dimension_numbers = #tpu.dot_dimension_numbers<[1], [0], [0], [1], [0, 0, 1, 1], [], []>} : vector<8x4xbf16>, vector<4x324xbf16>, vector<8x324xf32> -> vector<8x324xf32>
    %40 = arith.addf %35, %39 : vector<8x324xf32>
    %41 = vector.extract_strided_slice %1 {offsets = [0, 38], sizes = [4, 324], strides = [1, 1]} : vector<4x378xbf16> to vector<4x324xbf16>
    %c8 = arith.constant 8 : index
    %c0_26 = arith.constant 0 : index
    %c0_27 = arith.constant 0 : index
    %42 = vector.load %arg2[%c8, %c0_26, %c0_27] : memref<9x8x4xbf16, #tpu.memory_space<vmem>>, vector<1x8x4xbf16>
    %43 = vector.shape_cast %42 : vector<1x8x4xbf16> to vector<8x4xbf16>
    %cst_28 = arith.constant dense<0.000000e+00> : vector<8x324xf32>
    %44 = tpu.matmul %43, %41, %cst_28 {dimension_numbers = #tpu.dot_dimension_numbers<[1], [0], [0], [1], [0, 0, 1, 1], [], []>} : vector<8x4xbf16>, vector<4x324xbf16>, vector<8x324xf32> -> vector<8x324xf32>
    %45 = arith.addf %40, %44 : vector<8x324xf32>
    %c0_29 = arith.constant 0 : index
    %c0_30 = arith.constant 0 : index
    %46 = vector.load %arg3[%c0_29, %c0_30] : memref<8x1xf32, #tpu.memory_space<vmem>>, vector<8x1xf32>
    %47 = vector.broadcast %46 : vector<8x1xf32> to vector<8x324xf32>
    %48 = arith.mulf %45, %47 : vector<8x324xf32>
    %c0_31 = arith.constant 0 : index
    %c0_32 = arith.constant 0 : index
    %49 = vector.load %arg4[%c0_31, %c0_32] : memref<8x1xf32, #tpu.memory_space<vmem>>, vector<8x1xf32>
    %50 = vector.broadcast %49 : vector<8x1xf32> to vector<8x324xf32>
    %51 = arith.addf %48, %50 : vector<8x324xf32>
    %cst_33 = arith.constant 2.000000e+01 : f32
    %52 = vector.broadcast %cst_33 : f32 to vector<8x324xf32>
    %53 = arith.minimumf %51, %52 : vector<8x324xf32>
    %54 = math.exp %53 : vector<8x324xf32>
    %cst_34 = arith.constant 2.000000e+00 : f32
    %55 = vector.broadcast %cst_34 : f32 to vector<8x324xf32>
    %56 = arith.addf %54, %55 : vector<8x324xf32>
    %57 = arith.mulf %54, %56 : vector<8x324xf32>
    %58 = arith.mulf %51, %57 : vector<8x324xf32>
    %cst_35 = arith.constant 2.000000e+00 : f32
    %59 = vector.broadcast %cst_35 : f32 to vector<8x324xf32>
    %60 = arith.addf %57, %59 : vector<8x324xf32>
    %61 = tpu.reciprocal %60 : vector<8x324xf32> -> vector<8x324xf32>
    %62 = arith.mulf %58, %61 : vector<8x324xf32>
    %c0_36 = arith.constant 0 : index
    %c0_37 = arith.constant 0 : index
    %c0_38 = arith.constant 0 : index
    %63 = vector.load %arg5[%c0_36, %c0_37, %c0_38] : memref<1x8x324xf32, #tpu.memory_space<vmem>>, vector<1x8x324xf32>
    %64 = vector.shape_cast %63 : vector<1x8x324xf32> to vector<8x324xf32>
    %65 = vector.shape_cast %62 : vector<8x324xf32> to vector<1x8x324xf32>
    tpu.vector_store %arg5[%c0_36, %c0_37, %c0_38], %65 {strides = array<i32>} : memref<1x8x324xf32, #tpu.memory_space<vmem>>, vector<1x8x324xf32>,
    return
  }
  func.func @transform_0(%arg0: i32) -> (i32, i32, i32) {
    %c0_i32 = arith.constant 0 : i32
    %c0_i32_0 = arith.constant 0 : i32
    %c0_i32_1 = arith.constant 0 : i32
    return %arg0, %c0_i32, %c0_i32_0 : i32, i32, i32
  }
  func.func @transform_1(%arg0: i32) -> (i32, i32, i32) {
    %c0_i32 = arith.constant 0 : i32
    %c0_i32_0 = arith.constant 0 : i32
    %c0_i32_1 = arith.constant 0 : i32
    %c0_i32_2 = arith.constant 0 : i32
    return %c0_i32, %c0_i32_0, %c0_i32_1 : i32, i32, i32
  }
  func.func @transform_2(%arg0: i32) -> (i32, i32) {
    %c0_i32 = arith.constant 0 : i32
    %c0_i32_0 = arith.constant 0 : i32
    %c0_i32_1 = arith.constant 0 : i32
    return %c0_i32, %c0_i32_0 : i32, i32
  }
  func.func @transform_3(%arg0: i32) -> (i32, i32) {
    %c0_i32 = arith.constant 0 : i32
    %c0_i32_0 = arith.constant 0 : i32
    %c0_i32_1 = arith.constant 0 : i32
    return %c0_i32, %c0_i32_0 : i32, i32
  }
  func.func @transform_4(%arg0: i32) -> (i32, i32, i32) {
    %c0_i32 = arith.constant 0 : i32
    %c0_i32_0 = arith.constant 0 : i32
    %c0_i32_1 = arith.constant 0 : i32
    return %arg0, %c0_i32, %c0_i32_0 : i32, i32, i32
  }
}

</mosaic_0001>

<llo_original>
// kernel: conv_bn_mish.2
$region0: #{conv_bn_mish.2}
  #allocation0 [shape = 'u32[]', space=smem, size = 0x4, offset = 0x4, fixed_abs, tag = 'smem constant byte address 0x4 - core index']
  #allocation1 [shape = 'u32[144,128]{1,0:T(1,128)}', space=vmem, size = 0x12000, scoped, tag = 'internal scratch']
  %s0 = inlined_call_operand.vmem [shape: bf16[2,4,378], index: 0, kind: input, shape index: {}]
  %s1 = inlined_call_operand.vmem [shape: bf16[9,8,4], index: 1, kind: input, shape index: {}]
  %s2 = inlined_call_operand.vmem [shape: f32[1,324], index: 2, kind: input, shape index: {}]
  %s3 = inlined_call_operand.vmem [shape: f32[2,8,1], index: 3, kind: output, shape index: {0}]
  %s4 = inlined_call_operand.vmem [shape: f32[2,8,1], index: 4, kind: output, shape index: {1}]
  %5 = xla_tuple %s3, %s4
  %s6 = sld [smem:[#allocation0]]
  $region57: #{conv_bn_mish.2} parent=0
    _
  %s8 = ssub.s32 1, %s6
  %s9 = scalar_select 0, %s8, %s6
  loop: start=0, step=1, limit=4
  $region2: #{conv_bn_mish.2} parent=0 // loop_pre_header
    _
  $region3: #{conv_bn_mish.2} parent=0 // loop_header
    %s11 = sphi 0, %s15
    %p12 = scmp.ge.s32.totalorder %s11, 4
    %s18 = sphi 0, %s30
    %s19 = sphi 0, %s26
    %s20 = sphi 0, %s18
    %s21 = sphi 0, %s19
    %s22 = sphi 0, %s20
    %s23 = sphi 0, %s21
    %s35 = sphi 0, %s37
    %s38 = sphi 0, %s35
    %s39 = sphi 0, %s38
    %s55 = sphi 0, %s39
    %s59 = sphi 0, %s59
    %s61 = sphi 0, %s59
    %s62 = sphi 0, %s61
    %s76 = sphi 0, %s62
    %s80 = sphi 0, %s80
    %s82 = sphi 0, %s80
    %s83 = sphi 0, %s82
    %s97 = sphi 0, %s83
    %s103 = sphi 0, %s105
    %s106 = sphi 0, %s103
    %s107 = sphi 0, %s106
    %s123 = sphi 0, %s107
    %s129 = sphi 0, %s131
    %s132 = sphi 0, %s129
    %s133 = sphi 0, %s132
    %s149 = sphi 0, %s133
  $region4: #{conv_bn_mish.2} parent=0 // loop_header_branch
    %14 = sbr.rel (%p12) target = $region8
  $region5: #{conv_bn_mish.2} parent=0 // loop_body
    %s16 = ssub.s32 %s11, 1
    %s17 = ssub.s32 %s11, 2
    %s24 = sadd.s32 1, %s19
    %p25 = scmp.ge.s32.totalorder %s24, 1
    %s26 = scalar_select %p25, 0, %s24
    %s27 = sadd.s32 1, %s18
    %s28 = scalar_select %p25, %s27, %s18
    %p29 = scmp.ge.s32.totalorder %s28, 2
    %s30 = scalar_select %p29, 0, %s28
    %s31 = sadd.s32 %s18, %s19
    %s32 = sadd.s32 %s30, %s26
    %s33 = ssub.s32 %s31, %s32
    %p34 = scmp.eq.s32.totalorder %s33, 0
    %s36 = sadd.s32 %s35, 1
    %s37 = scalar_select %p34, %s35, %s36
    %p40 = pneg %p34
    %p41 = scmp.eq.s32.totalorder %s11, 1
    %p42 = por %p40, %p41
    %p43 = scmp.ne.s32.totalorder %s35, %s38
    %p44 = scmp.eq.s32.totalorder %s11, 0
    %p45 = por %p43, %p44
    %p46 = scmp.ne.s32.totalorder %s35, %s38
    %p47 = scmp.eq.s32.totalorder %s16, 1
    %p48 = por %p46, %p47
    %p49 = scmp.ne.s32.totalorder %s38, %s39
    %p50 = scmp.eq.s32.totalorder %s16, 0
    %p51 = por %p49, %p50
    %p52 = scmp.ne.s32.totalorder %s38, %s39
    %p53 = scmp.eq.s32.totalorder %s17, 1
    %p54 = por %p52, %p53
    %p56 = scmp.ne.s32.totalorder %s39, %s55
    %p57 = scmp.eq.s32.totalorder %s17, 0
    %p58 = por %p56, %p57
    %s60 = sadd.s32 %s59, 1
    %p63 = scmp.eq.s32.totalorder %s11, 1
    %p64 = scmp.ne.s32.totalorder %s59, %s61
    %p65 = scmp.eq.s32.totalorder %s11, 0
    %p66 = por %p64, %p65
    %p67 = scmp.ne.s32.totalorder %s59, %s61
    %p68 = scmp.eq.s32.totalorder %s16, 1
    %p69 = por %p67, %p68
    %p70 = scmp.ne.s32.totalorder %s61, %s62
    %p71 = scmp.eq.s32.totalorder %s16, 0
    %p72 = por %p70, %p71
    %p73 = scmp.ne.s32.totalorder %s61, %s62
    %p74 = scmp.eq.s32.totalorder %s17, 1
    %p75 = por %p73, %p74
    %p77 = scmp.ne.s32.totalorder %s62, %s76
    %p78 = scmp.eq.s32.totalorder %s17, 0
    %p79 = por %p77, %p78
    %s81 = sadd.s32 %s80, 1
    %p84 = scmp.eq.s32.totalorder %s11, 1
    %p85 = scmp.ne.s32.totalorder %s80, %s82
    %p86 = scmp.eq.s32.totalorder %s11, 0
    %p87 = por %p85, %p86
    %p88 = scmp.ne.s32.totalorder %s80, %s82
    %p89 = scmp.eq.s32.totalorder %s16, 1
    %p90 = por %p88, %p89
    %p91 = scmp.ne.s32.totalorder %s82, %s83
    %p92 = scmp.eq.s32.totalorder %s16, 0
    %p93 = por %p91, %p92
    %p94 = scmp.ne.s32.totalorder %s82, %s83
    %p95 = scmp.eq.s32.totalorder %s17, 1
    %p96 = por %p94, %p95
    %p98 = scmp.ne.s32.totalorder %s83, %s97
    %p99 = scmp.eq.s32.totalorder %s17, 0
    %p100 = por %p98, %p99
    %s101 = ssub.s32 %s18, %s30
    %p102 = scmp.eq.s32.totalorder %s101, 0
    %s104 = sadd.s32 %s103, 1
    %s105 = scalar_select %p102, %s103, %s104
    %p108 = pneg %p102
    %p109 = scmp.eq.s32.totalorder %s11, 1
    %p110 = por %p108, %p109
    %p111 = scmp.ne.s32.totalorder %s103, %s106
    %p112 = scmp.eq.s32.totalorder %s11, 0
    %p113 = por %p111, %p112
    %p114 = scmp.ne.s32.totalorder %s103, %s106
    %p115 = scmp.eq.s32.totalorder %s16, 1
    %p116 = por %p114, %p115
    %p117 = scmp.ne.s32.totalorder %s106, %s107
    %p118 = scmp.eq.s32.totalorder %s16, 0
    %p119 = por %p117, %p118
    %p120 = scmp.ne.s32.totalorder %s106, %s107
    %p121 = scmp.eq.s32.totalorder %s17, 1
    %p122 = por %p120, %p121
    %p124 = scmp.ne.s32.totalorder %s107, %s123
    %p125 = scmp.eq.s32.totalorder %s17, 0
    %p126 = por %p124, %p125
    %s127 = ssub.s32 %s18, %s30
    %p128 = scmp.eq.s32.totalorder %s127, 0
    %s130 = sadd.s32 %s129, 1
    %s131 = scalar_select %p128, %s129, %s130
    %p134 = pneg %p128
    %p135 = scmp.eq.s32.totalorder %s11, 1
    %p136 = por %p134, %p135
    %p137 = scmp.ne.s32.totalorder %s129, %s132
    %p138 = scmp.eq.s32.totalorder %s11, 0
    %p139 = por %p137, %p138
    %p140 = scmp.ne.s32.totalorder %s129, %s132
    %p141 = scmp.eq.s32.totalorder %s16, 1
    %p142 = por %p140, %p141
    %p143 = scmp.ne.s32.totalorder %s132, %s133
    %p144 = scmp.eq.s32.totalorder %s16, 0
    %p145 = por %p143, %p144
    %p146 = scmp.ne.s32.totalorder %s132, %s133
    %p147 = scmp.eq.s32.totalorder %s17, 1
    %p148 = por %p146, %p147
    %p150 = scmp.ne.s32.totalorder %s133, %s149
    %p151 = scmp.eq.s32.totalorder %s17, 0
    %p152 = por %p150, %p151
    %p153 = scmp.le.s32.totalorder 1, %s11
    %p154 = scmp.lt.s32.totalorder %s11, 3
    %p155 = pnand %p153, %p154
    %p156 = pneg %p155
    // Predicated region
    $region9: #{conv_bn_mish.2} parent=5 // pred_check
      _
    $region10: #{conv_bn_mish.2} parent=5 // pred_check_branch
      %158 = sbr.rel (%p155) target = $region12
    $region11: #{conv_bn_mish.2} parent=5 // pred_region
      %s159 = ssub.s32 %s11, 1
      // Predicated region
      $region13: #{conv_bn_mish.2} parent=11 // pred_check
        %p160 = pneg %p72
      $region14: #{conv_bn_mish.2} parent=11 // pred_check_branch
        %162 = sbr.rel (%p160) target = $region16
      $region15: #{conv_bn_mish.2} parent=11 // pred_region
        _
      $region16: #{conv_bn_mish.2} parent=11 // pred_fallthru
        _
      // Predicated region
      $region17: #{conv_bn_mish.2} parent=11 // pred_check
        %p163 = pneg %p93
      $region18: #{conv_bn_mish.2} parent=11 // pred_check_branch
        %165 = sbr.rel (%p163) target = $region20
      $region19: #{conv_bn_mish.2} parent=11 // pred_region
        _
      $region20: #{conv_bn_mish.2} parent=11 // pred_fallthru
        _
    $region12: #{conv_bn_mish.2} parent=5 // pred_fallthru
      _
    %p166 = scmp.lt.s32.totalorder %s11, 2
    // Predicated region
    $region21: #{conv_bn_mish.2} parent=5 // pred_check
      %p167 = pneg %p166
    $region22: #{conv_bn_mish.2} parent=5 // pred_check_branch
      %169 = sbr.rel (%p167) target = $region24
    $region23: #{conv_bn_mish.2} parent=5 // pred_region
      // Predicated region
      $region25: #{conv_bn_mish.2} parent=23 // pred_check
        %p170 = pneg %p45
      $region26: #{conv_bn_mish.2} parent=23 // pred_check_branch
        %172 = sbr.rel (%p170) target = $region28
      $region27: #{conv_bn_mish.2} parent=23 // pred_region
        %s173 = sadd.s32 %s18, %s19
        %p174 = scmp.lt.s32.totalorder %s173, 1
        %s175 = scalar_select %p174, %s173, 1
        %s176 = smul.addr %s175, 3
        %s177 = smul.addr %s176, 2
        %s178 = scalar_lea.vmem %s0, %s177
        %s179 = sadd.s32 %s18, %s19
      $region28: #{conv_bn_mish.2} parent=23 // pred_fallthru
        _
    $region24: #{conv_bn_mish.2} parent=5 // pred_fallthru
      _
    %p180 = scmp.le.s32.totalorder 1, %s11
    %p181 = scmp.lt.s32.totalorder %s11, 3
    %p182 = pnand %p180, %p181
    %p183 = pneg %p182
    // Predicated region
    $region29: #{conv_bn_mish.2} parent=5 // pred_check
      _
    $region30: #{conv_bn_mish.2} parent=5 // pred_check_branch
      %185 = sbr.rel (%p182) target = $region32
    $region31: #{conv_bn_mish.2} parent=5 // pred_region
      %s186 = ssub.s32 %s11, 1
      %s187 = sadd.s32 %s20, %s21
      %p188 = scmp.lt.s32.totalorder %s187, 1
      %s189 = scalar_select %p188, %s187, 1
      %s190 = smul.addr %s189, 3
      %s191 = smul.addr %s190, 2
      %s192 = scalar_lea.vmem %s0, %s191
      %p193 = pneg %p51
      %p194 = pneg %p48
      %p195 = pneg %p72
      %p196 = pneg %p69
      %p197 = pneg %p93
      %p198 = pneg %p90
      %p199 = pneg %p119
      %p200 = pneg %p116
      %p201 = scmp.lt.s32.totalorder %s20, 1
      %s202 = scalar_select %p201, %s20, 1
      %s203 = smul.addr %s202, 8
      %s204 = scalar_lea.vmem %s3, %s203
      %p205 = pneg %p145
      %p206 = pneg %p142
      %p207 = scmp.lt.s32.totalorder %s20, 1
      %s208 = scalar_select %p207, %s20, 1
      %s209 = smul.addr %s208, 8
      %s210 = scalar_lea.vmem %s4, %s209
      %s211 = sadd.s32 %s20, %s21
      %p212 = scmp.lt.s32.totalorder %s211, 1
      %s213 = scalar_select %p212, %s211, 1
      %s214 = smul.addr %s213, 3
      %s215 = smul.addr %s214, 2
      %s216 = scalar_lea.vmem %s0, %s215
      %s217 = sadd.s32 %s20, %s21
      %p218 = scmp.lt.s32.totalorder %s20, 1
      %s219 = scalar_select %p218, %s20, 1
      %s220 = smul.addr %s219, 8
      %s221 = scalar_lea.vmem %s3, %s220
      %p222 = scmp.lt.s32.totalorder %s20, 1
      %s223 = scalar_select %p222, %s20, 1
      %s224 = smul.addr %s223, 8
      %s225 = scalar_lea.vmem %s4, %s224
      %p227 = scmp.eq.s32.totalorder %s21, 0
      // Predicated region
      $region33: #{conv_bn_mish.2} parent=31 // pred_check
        %p228 = pneg %p227
      $region34: #{conv_bn_mish.2} parent=31 // pred_check_branch
        %230 = sbr.rel (%p228) target = $region36
      $region35: #{conv_bn_mish.2} parent=31 // pred_region
        %vm231 = vcmask 7168
        %232 = vst.msk [vmem:[%s221] sm:$0xff] %vm231, 0.0
        %233 = vst.msk [vmem:[%s225] sm:$0xff] %vm231, 0.0
      $region36: #{conv_bn_mish.2} parent=31 // pred_fallthru
        _
      %v234 = vld [vmem:[%s216] sm:$0x3f]
      %v235 = vld [vmem:[%s1] sm:$0xf]
      %s236 = scalar_lea.vmem %s1, 4
      %v237 = vld [vmem:[%s236] sm:$0xf]
      %v239 = vcombine.high %v234, %v234
      %v241 = vunpack.c.l.s4 1983009808
      %v242 = vunpack.c.0.s8 %v241
      %v243 = vlaneseq
      %v244 = vshrl.u32 %v243, 7
      %v245 = vsub.s32 %v242, %v244
      %v246 = vrot.slane %v234, %v245
      %v248 = vunpack.c.l.s4 1983009808
      %v249 = vunpack.c.0.s8 %v248
      %v250 = vlaneseq
      %v251 = vshrl.u32 %v250, 7
      %v252 = vsub.s32 %v249, %v251
      %v253 = vrot.slane %v239, %v252
      %v254 = vcombine.high %v246, %v246
      %255 = vrot.lane.b32.xlu0 %v246, 127
      %v256 = vpop.permute.xlu0 %255
      %257 = vrot.lane.b32.xlu0 %v254, 127
      %v258 = vpop.permute.xlu0 %257
      %259 = vrot.lane.b32.xlu0 %v253, 127
      %v260 = vpop.permute.xlu0 %259
      %vm261 = vcmask 1039360
      %v262 = vsel %vm261, %v256, %v258
      %v263 = vsel %vm261, %v258, %v260
      %vm264 = vcmask 31744
      %v266 = vsel %vm264, %v237, 0
      %vm268 = vcmask 1041408
      %v270 = vsel %vm268, %v262, 0
      %v273 = vsel %vm268, %v263, 0
      %v276 = vsel %vm268, %v260, 0
      %278 = vmatprep.subr.bf16.mxu0 %v273
      %279 = vmatpush1.bf16.msra.mxu0 %v270
      %280 = vmatprep.subr.bf16.mxu0 0
      %281 = vmatpush1.bf16.msra.mxu0 0
      %282 = vmatprep.subr.bf16.mxu0 0
      %283 = vmatpush1.bf16.msra.mxu0 0
      %284 = vmatprep.subr.bf16.mxu0 0
      %285 = vmatpush1.bf16.msra.mxu0 0
      %286 = vmatprep.subr.bf16.mxu0 0
      %287 = vmatpush1.bf16.msra.mxu0 0
      %288 = vmatprep.subr.bf16.mxu0 0
      %289 = vmatpush1.bf16.msra.mxu0 0
      %290 = vmatprep.subr.bf16.mxu0 0
      %291 = vmatpush1.bf16.msra.mxu0 0
      %292 = vmatprep.subr.bf16.mxu0 0
      %293 = vmatpush1.bf16.msra.mxu0 0
      %294 = vmatprep.subr.bf16.mxu0 0
      %295 = vmatpush1.bf16.msra.mxu0 0
      %296 = vmatprep.subr.bf16.mxu0 0
      %297 = vmatpush1.bf16.msra.mxu0 0
      %298 = vmatprep.subr.bf16.mxu0 0
      %299 = vmatpush1.bf16.msra.mxu0 0
      %300 = vmatprep.subr.bf16.mxu0 0
      %301 = vmatpush1.bf16.msra.mxu0 0
      %302 = vmatprep.subr.bf16.mxu0 0
      %303 = vmatpush1.bf16.msra.mxu0 0
      %304 = vmatprep.subr.bf16.mxu0 0
      %305 = vmatpush1.bf16.msra.mxu0 0
      %306 = vmatprep.subr.bf16.mxu0 0
      %307 = vmatpush1.bf16.msra.mxu0 0
      %308 = vmatprep.subr.bf16.mxu0 0
      %309 = vmatpush1.bf16.msra.mxu0 0
      %310 = vmatprep.mubr.bf16.mxu0 0
      %311 = vmatmul.mubr.bf16.gmra.mrb[0].mxu0 %v266
      %v312 = vpop.f32.mrb[0].mxu0
      %v313 = vadd.f32 0.0, %v312
      %v314 = vpop.f32.mrb[0].mxu0
      %v315 = vadd.f32 0.0, %v314
      %v316 = vpop.f32.mrb[0].mxu0
      %v317 = vpop.f32.mrb[0].mxu0
      %318 = vdwg.mxu0
      %319 = vmatprep.subr.bf16.mxu0 0
      %320 = vmatpush1.bf16.msra.mxu0 %v276
      %321 = vmatprep.subr.bf16.mxu0 0
      %322 = vmatpush1.bf16.msra.mxu0 0
      %323 = vmatprep.subr.bf16.mxu0 0
      %324 = vmatpush1.bf16.msra.mxu0 0
      %325 = vmatprep.subr.bf16.mxu0 0
      %326 = vmatpush1.bf16.msra.mxu0 0
      %327 = vmatprep.subr.bf16.mxu0 0
      %328 = vmatpush1.bf16.msra.mxu0 0
      %329 = vmatprep.subr.bf16.mxu0 0
      %330 = vmatpush1.bf16.msra.mxu0 0
      %331 = vmatprep.subr.bf16.mxu0 0
      %332 = vmatpush1.bf16.msra.mxu0 0
      %333 = vmatprep.subr.bf16.mxu0 0
      %334 = vmatpush1.bf16.msra.mxu0 0
      %335 = vmatprep.subr.bf16.mxu0 0
      %336 = vmatpush1.bf16.msra.mxu0 0
      %337 = vmatprep.subr.bf16.mxu0 0
      %338 = vmatpush1.bf16.msra.mxu0 0
      %339 = vmatprep.subr.bf16.mxu0 0
      %340 = vmatpush1.bf16.msra.mxu0 0
      %341 = vmatprep.subr.bf16.mxu0 0
      %342 = vmatpush1.bf16.msra.mxu0 0
      %343 = vmatprep.subr.bf16.mxu0 0
      %344 = vmatpush1.bf16.msra.mxu0 0
      %345 = vmatprep.subr.bf16.mxu0 0
      %346 = vmatpush1.bf16.msra.mxu0 0
      %347 = vmatprep.subr.bf16.mxu0 0
      %348 = vmatpush1.bf16.msra.mxu0 0
      %349 = vmatprep.subr.bf16.mxu0 0
      %350 = vmatpush1.bf16.msra.mxu0 0
      %351 = vmatprep.mubr.bf16.mxu0 0
      %352 = vmatmul.mubr.bf16.gmra.mrb[0].mxu0 %v266
      %v353 = vpop.f32.mrb[0].mxu0
      %v354 = vadd.f32 0.0, %v353
      %v355 = vpop.f32.mrb[0].mxu0
      %v356 = vpop.f32.mrb[0].mxu0
      %v357 = vpop.f32.mrb[0].mxu0
      %358 = vdwg.mxu0
      %v360 = vsel %vm264, %v235, 0
      %v363 = vsel %vm268, %v246, 0
      %v366 = vsel %vm268, %v254, 0
      %v369 = vsel %vm268, %v253, 0
      %371 = vmatprep.subr.bf16.mxu0 %v366
      %372 = vmatpush1.bf16.msra.mxu0 %v363
      %373 = vmatprep.subr.bf16.mxu0 0
      %374 = vmatpush1.bf16.msra.mxu0 0
      %375 = vmatprep.subr.bf16.mxu0 0
      %376 = vmatpush1.bf16.msra.mxu0 0
      %377 = vmatprep.subr.bf16.mxu0 0
      %378 = vmatpush1.bf16.msra.mxu0 0
      %379 = vmatprep.subr.bf16.mxu0 0
      %380 = vmatpush1.bf16.msra.mxu0 0
      %381 = vmatprep.subr.bf16.mxu0 0
      %382 = vmatpush1.bf16.msra.mxu0 0
      %383 = vmatprep.subr.bf16.mxu0 0
      %384 = vmatpush1.bf16.msra.mxu0 0
      %385 = vmatprep.subr.bf16.mxu0 0
      %386 = vmatpush1.bf16.msra.mxu0 0
      %387 = vmatprep.subr.bf16.mxu0 0
      %388 = vmatpush1.bf16.msra.mxu0 0
      %389 = vmatprep.subr.bf16.mxu0 0
      %390 = vmatpush1.bf16.msra.mxu0 0
      %391 = vmatprep.subr.bf16.mxu0 0
      %392 = vmatpush1.bf16.msra.mxu0 0
      %393 = vmatprep.subr.bf16.mxu0 0
      %394 = vmatpush1.bf16.msra.mxu0 0
      %395 = vmatprep.subr.bf16.mxu0 0
      %396 = vmatpush1.bf16.msra.mxu0 0
      %397 = vmatprep.subr.bf16.mxu0 0
      %398 = vmatpush1.bf16.msra.mxu0 0
      %399 = vmatprep.subr.bf16.mxu0 0
      %400 = vmatpush1.bf16.msra.mxu0 0
      %401 = vmatprep.subr.bf16.mxu0 0
      %402 = vmatpush1.bf16.msra.mxu0 0
      %403 = vmatprep.mubr.bf16.mxu0 0
      %404 = vmatmul.mubr.bf16.gmra.mrb[0].mxu0 %v360
      %v405 = vpop.f32.mrb[0].mxu0
      %v406 = vadd.f32 %v313, %v405
      %v407 = vpop.f32.mrb[0].mxu0
      %v408 = vadd.f32 %v315, %v407
      %v409 = vpop.f32.mrb[0].mxu0
      %v410 = vpop.f32.mrb[0].mxu0
      %411 = vdwg.mxu0
      %412 = vmatprep.subr.bf16.mxu0 0
      %413 = vmatpush1.bf16.msra.mxu0 %v369
      %414 = vmatprep.subr.bf16.mxu0 0
      %415 = vmatpush1.bf16.msra.mxu0 0
      %416 = vmatprep.subr.bf16.mxu0 0
      %417 = vmatpush1.bf16.msra.mxu0 0
      %418 = vmatprep.subr.bf16.mxu0 0
      %419 = vmatpush1.bf16.msra.mxu0 0
      %420 = vmatprep.subr.bf16.mxu0 0
      %421 = vmatpush1.bf16.msra.mxu0 0
      %422 = vmatprep.subr.bf16.mxu0 0
      %423 = vmatpush1.bf16.msra.mxu0 0
      %424 = vmatprep.subr.bf16.mxu0 0
      %425 = vmatpush1.bf16.msra.mxu0 0
      %426 = vmatprep.subr.bf16.mxu0 0
      %427 = vmatpush1.bf16.msra.mxu0 0
      %428 = vmatprep.subr.bf16.mxu0 0
      %429 = vmatpush1.bf16.msra.mxu0 0
      %430 = vmatprep.subr.bf16.mxu0 0
      %431 = vmatpush1.bf16.msra.mxu0 0
      %432 = vmatprep.subr.bf16.mxu0 0
      %433 = vmatpush1.bf16.msra.mxu0 0
      %434 = vmatprep.subr.bf16.mxu0 0
      %435 = vmatpush1.bf16.msra.mxu0 0
      %436 = vmatprep.subr.bf16.mxu0 0
      %437 = vmatpush1.bf16.msra.mxu0 0
      %438 = vmatprep.subr.bf16.mxu0 0
      %439 = vmatpush1.bf16.msra.mxu0 0
      %440 = vmatprep.subr.bf16.mxu0 0
      %441 = vmatpush1.bf16.msra.mxu0 0
      %442 = vmatprep.subr.bf16.mxu0 0
      %443 = vmatpush1.bf16.msra.mxu0 0
      %444 = vmatprep.mubr.bf16.mxu0 0
      %445 = vmatmul.mubr.bf16.gmra.mrb[0].mxu0 %v360
      %v446 = vpop.f32.mrb[0].mxu0
      %v447 = vadd.f32 %v354, %v446
      %v448 = vpop.f32.mrb[0].mxu0
      %v449 = vpop.f32.mrb[0].mxu0
      %v450 = vpop.f32.mrb[0].mxu0
      %451 = vdwg.mxu0
      %s452 = scalar_lea.vmem %s1, 8
      %v453 = vld [vmem:[%s452] sm:$0xf]
      %454 = vrot.lane.b32.xlu0 %v246, 126
      %v455 = vpop.permute.xlu0 %454
      %456 = vrot.lane.b32.xlu0 %v254, 126
      %v457 = vpop.permute.xlu0 %456
      %458 = vrot.lane.b32.xlu0 %v253, 126
      %v459 = vpop.permute.xlu0 %458
      %vm460 = vcmask 1031168
      %v461 = vsel %vm460, %v455, %v457
      %v462 = vsel %vm460, %v457, %v459
      %v464 = vsel %vm264, %v453, 0
      %v467 = vsel %vm268, %v461, 0
      %v470 = vsel %vm268, %v462, 0
      %v473 = vsel %vm268, %v459, 0
      %475 = vmatprep.subr.bf16.mxu0 %v470
      %476 = vmatpush1.bf16.msra.mxu0 %v467
      %477 = vmatprep.subr.bf16.mxu0 0
      %478 = vmatpush1.bf16.msra.mxu0 0
      %479 = vmatprep.subr.bf16.mxu0 0
      %480 = vmatpush1.bf16.msra.mxu0 0
      %481 = vmatprep.subr.bf16.mxu0 0
      %482 = vmatpush1.bf16.msra.mxu0 0
      %483 = vmatprep.subr.bf16.mxu0 0
      %484 = vmatpush1.bf16.msra.mxu0 0
      %485 = vmatprep.subr.bf16.mxu0 0
      %486 = vmatpush1.bf16.msra.mxu0 0
      %487 = vmatprep.subr.bf16.mxu0 0
      %488 = vmatpush1.bf16.msra.mxu0 0
      %489 = vmatprep.subr.bf16.mxu0 0
      %490 = vmatpush1.bf16.msra.mxu0 0
      %491 = vmatprep.subr.bf16.mxu0 0
      %492 = vmatpush1.bf16.msra.mxu0 0
      %493 = vmatprep.subr.bf16.mxu0 0
      %494 = vmatpush1.bf16.msra.mxu0 0
      %495 = vmatprep.subr.bf16.mxu0 0
      %496 = vmatpush1.bf16.msra.mxu0 0
      %497 = vmatprep.subr.bf16.mxu0 0
      %498 = vmatpush1.bf16.msra.mxu0 0
      %499 = vmatprep.subr.bf16.mxu0 0
      %500 = vmatpush1.bf16.msra.mxu0 0
      %501 = vmatprep.subr.bf16.mxu0 0
      %502 = vmatpush1.bf16.msra.mxu0 0
      %503 = vmatprep.subr.bf16.mxu0 0
      %504 = vmatpush1.bf16.msra.mxu0 0
      %505 = vmatprep.subr.bf16.mxu0 0
      %506 = vmatpush1.bf16.msra.mxu0 0
      %507 = vmatprep.mubr.bf16.mxu0 0
      %508 = vmatmul.mubr.bf16.gmra.mrb[0].mxu0 %v464
      %v509 = vpop.f32.mrb[0].mxu0
      %v510 = vadd.f32 0.0, %v509
      %v511 = vpop.f32.mrb[0].mxu0
      %v512 = vadd.f32 0.0, %v511
      %v513 = vpop.f32.mrb[0].mxu0
      %v514 = vpop.f32.mrb[0].mxu0
      %515 = vdwg.mxu0
      %516 = vmatprep.subr.bf16.mxu0 0
      %517 = vmatpush1.bf16.msra.mxu0 %v473
      %518 = vmatprep.subr.bf16.mxu0 0
      %519 = vmatpush1.bf16.msra.mxu0 0
      %520 = vmatprep.subr.bf16.mxu0 0
      %521 = vmatpush1.bf16.msra.mxu0 0
      %522 = vmatprep.subr.bf16.mxu0 0
      %523 = vmatpush1.bf16.msra.mxu0 0
      %524 = vmatprep.subr.bf16.mxu0 0
      %525 = vmatpush1.bf16.msra.mxu0 0
      %526 = vmatprep.subr.bf16.mxu0 0
      %527 = vmatpush1.bf16.msra.mxu0 0
      %528 = vmatprep.subr.bf16.mxu0 0
      %529 = vmatpush1.bf16.msra.mxu0 0
      %530 = vmatprep.subr.bf16.mxu0 0
      %531 = vmatpush1.bf16.msra.mxu0 0
      %532 = vmatprep.subr.bf16.mxu0 0
      %533 = vmatpush1.bf16.msra.mxu0 0
      %534 = vmatprep.subr.bf16.mxu0 0
      %535 = vmatpush1.bf16.msra.mxu0 0
      %536 = vmatprep.subr.bf16.mxu0 0
      %537 = vmatpush1.bf16.msra.mxu0 0
      %538 = vmatprep.subr.bf16.mxu0 0
      %539 = vmatpush1.bf16.msra.mxu0 0
      %540 = vmatprep.subr.bf16.mxu0 0
      %541 = vmatpush1.bf16.msra.mxu0 0
      %542 = vmatprep.subr.bf16.mxu0 0
      %543 = vmatpush1.bf16.msra.mxu0 0
      %544 = vmatprep.subr.bf16.mxu0 0
      %545 = vmatpush1.bf16.msra.mxu0 0
      %546 = vmatprep.subr.bf16.mxu0 0
      %547 = vmatpush1.bf16.msra.mxu0 0
      %548 = vmatprep.mubr.bf16.mxu0 0
      %549 = vmatmul.mubr.bf16.gmra.mrb[0].mxu0 %v464
      %v550 = vpop.f32.mrb[0].mxu0
      %v551 = vadd.f32 0.0, %v550
      %v552 = vpop.f32.mrb[0].mxu0
      %v553 = vpop.f32.mrb[0].mxu0
      %v554 = vpop.f32.mrb[0].mxu0
      %555 = vdwg.mxu0
      %v556 = vadd.f32 %v406, %v510
      %v557 = vadd.f32 %v408, %v512
      %v558 = vadd.f32 %v447, %v551
      %s559 = scalar_lea.vmem %s1, 12
      %v560 = vld [vmem:[%s559] sm:$0xf]
      %561 = vrot.lane.b32.xlu0 %v246, 110
      %v562 = vpop.permute.xlu0 %561
      %563 = vrot.lane.b32.xlu0 %v254, 110
      %v564 = vpop.permute.xlu0 %563
      %565 = vrot.lane.b32.xlu0 %v253, 110
      %v566 = vpop.permute.xlu0 %565
      %vm567 = vcmask 900096
      %v568 = vsel %vm567, %v562, %v564
      %v569 = vsel %vm567, %v564, %v566
      %v571 = vsel %vm264, %v560, 0
      %v574 = vsel %vm268, %v568, 0
      %v577 = vsel %vm268, %v569, 0
      %v580 = vsel %vm268, %v566, 0
      %582 = vmatprep.subr.bf16.mxu0 %v577
      %583 = vmatpush1.bf16.msra.mxu0 %v574
      %584 = vmatprep.subr.bf16.mxu0 0
      %585 = vmatpush1.bf16.msra.mxu0 0
      %586 = vmatprep.subr.bf16.mxu0 0
      %587 = vmatpush1.bf16.msra.mxu0 0
      %588 = vmatprep.subr.bf16.mxu0 0
      %589 = vmatpush1.bf16.msra.mxu0 0
      %590 = vmatprep.subr.bf16.mxu0 0
      %591 = vmatpush1.bf16.msra.mxu0 0
      %592 = vmatprep.subr.bf16.mxu0 0
      %593 = vmatpush1.bf16.msra.mxu0 0
      %594 = vmatprep.subr.bf16.mxu0 0
      %595 = vmatpush1.bf16.msra.mxu0 0
      %596 = vmatprep.subr.bf16.mxu0 0
      %597 = vmatpush1.bf16.msra.mxu0 0
      %598 = vmatprep.subr.bf16.mxu0 0
      %599 = vmatpush1.bf16.msra.mxu0 0
      %600 = vmatprep.subr.bf16.mxu0 0
      %601 = vmatpush1.bf16.msra.mxu0 0
      %602 = vmatprep.subr.bf16.mxu0 0
      %603 = vmatpush1.bf16.msra.mxu0 0
      %604 = vmatprep.subr.bf16.mxu0 0
      %605 = vmatpush1.bf16.msra.mxu0 0
      %606 = vmatprep.subr.bf16.mxu0 0
      %607 = vmatpush1.bf16.msra.mxu0 0
      %608 = vmatprep.subr.bf16.mxu0 0
      %609 = vmatpush1.bf16.msra.mxu0 0
      %610 = vmatprep.subr.bf16.mxu0 0
      %611 = vmatpush1.bf16.msra.mxu0 0
      %612 = vmatprep.subr.bf16.mxu0 0
      %613 = vmatpush1.bf16.msra.mxu0 0
      %614 = vmatprep.mubr.bf16.mxu0 0
      %615 = vmatmul.mubr.bf16.gmra.mrb[0].mxu0 %v571
      %v616 = vpop.f32.mrb[0].mxu0
      %v617 = vadd.f32 0.0, %v616
      %v618 = vpop.f32.mrb[0].mxu0
      %v619 = vadd.f32 0.0, %v618
      %v620 = vpop.f32.mrb[0].mxu0
      %v621 = vpop.f32.mrb[0].mxu0
      %622 = vdwg.mxu0
      %623 = vmatprep.subr.bf16.mxu0 0
      %624 = vmatpush1.bf16.msra.mxu0 %v580
      %625 = vmatprep.subr.bf16.mxu0 0
      %626 = vmatpush1.bf16.msra.mxu0 0
      %627 = vmatprep.subr.bf16.mxu0 0
      %628 = vmatpush1.bf16.msra.mxu0 0
      %629 = vmatprep.subr.bf16.mxu0 0
      %630 = vmatpush1.bf16.msra.mxu0 0
      %631 = vmatprep.subr.bf16.mxu0 0
      %632 = vmatpush1.bf16.msra.mxu0 0
      %633 = vmatprep.subr.bf16.mxu0 0
      %634 = vmatpush1.bf16.msra.mxu0 0
      %635 = vmatprep.subr.bf16.mxu0 0
      %636 = vmatpush1.bf16.msra.mxu0 0
      %637 = vmatprep.subr.bf16.mxu0 0
      %638 = vmatpush1.bf16.msra.mxu0 0
      %639 = vmatprep.subr.bf16.mxu0 0
      %640 = vmatpush1.bf16.msra.mxu0 0
      %641 = vmatprep.subr.bf16.mxu0 0
      %642 = vmatpush1.bf16.msra.mxu0 0
      %643 = vmatprep.subr.bf16.mxu0 0
      %644 = vmatpush1.bf16.msra.mxu0 0
      %645 = vmatprep.subr.bf16.mxu0 0
      %646 = vmatpush1.bf16.msra.mxu0 0
      %647 = vmatprep.subr.bf16.mxu0 0
      %648 = vmatpush1.bf16.msra.mxu0 0
      %649 = vmatprep.subr.bf16.mxu0 0
      %650 = vmatpush1.bf16.msra.mxu0 0
      %651 = vmatprep.subr.bf16.mxu0 0
      %652 = vmatpush1.bf16.msra.mxu0 0
      %653 = vmatprep.subr.bf16.mxu0 0
      %654 = vmatpush1.bf16.msra.mxu0 0
      %655 = vmatprep.mubr.bf16.mxu0 0
      %656 = vmatmul.mubr.bf16.gmra.mrb[0].mxu0 %v571
      %v657 = vpop.f32.mrb[0].mxu0
      %v658 = vadd.f32 0.0, %v657
      %v659 = vpop.f32.mrb[0].mxu0
      %v660 = vpop.f32.mrb[0].mxu0
      %v661 = vpop.f32.mrb[0].mxu0
      %662 = vdwg.mxu0
      %v663 = vadd.f32 %v556, %v617
      %v664 = vadd.f32 %v557, %v619
      %v665 = vadd.f32 %v558, %v658
      %s666 = scalar_lea.vmem %s1, 16
      %v667 = vld [vmem:[%s666] sm:$0xf]
      %668 = vrot.lane.b32.xlu0 %v246, 109
      %v669 = vpop.permute.xlu0 %668
      %670 = vrot.lane.b32.xlu0 %v254, 109
      %v671 = vpop.permute.xlu0 %670
      %672 = vrot.lane.b32.xlu0 %v253, 109
      %v673 = vpop.permute.xlu0 %672
      %vm674 = vcmask 891904
      %v675 = vsel %vm674, %v669, %v671
      %v676 = vsel %vm674, %v671, %v673
      %v678 = vsel %vm264, %v667, 0
      %v681 = vsel %vm268, %v675, 0
      %v684 = vsel %vm268, %v676, 0
      %v687 = vsel %vm268, %v673, 0
      %689 = vmatprep.subr.bf16.mxu0 %v684
      %690 = vmatpush1.bf16.msra.mxu0 %v681
      %691 = vmatprep.subr.bf16.mxu0 0
      %692 = vmatpush1.bf16.msra.mxu0 0
      %693 = vmatprep.subr.bf16.mxu0 0
      %694 = vmatpush1.bf16.msra.mxu0 0
      %695 = vmatprep.subr.bf16.mxu0 0
      %696 = vmatpush1.bf16.msra.mxu0 0
      %697 = vmatprep.subr.bf16.mxu0 0
      %698 = vmatpush1.bf16.msra.mxu0 0
      %699 = vmatprep.subr.bf16.mxu0 0
      %700 = vmatpush1.bf16.msra.mxu0 0
      %701 = vmatprep.subr.bf16.mxu0 0
      %702 = vmatpush1.bf16.msra.mxu0 0
      %703 = vmatprep.subr.bf16.mxu0 0
      %704 = vmatpush1.bf16.msra.mxu0 0
      %705 = vmatprep.subr.bf16.mxu0 0
      %706 = vmatpush1.bf16.msra.mxu0 0
      %707 = vmatprep.subr.bf16.mxu0 0
      %708 = vmatpush1.bf16.msra.mxu0 0
      %709 = vmatprep.subr.bf16.mxu0 0
      %710 = vmatpush1.bf16.msra.mxu0 0
      %711 = vmatprep.subr.bf16.mxu0 0
      %712 = vmatpush1.bf16.msra.mxu0 0
      %713 = vmatprep.subr.bf16.mxu0 0
      %714 = vmatpush1.bf16.msra.mxu0 0
      %715 = vmatprep.subr.bf16.mxu0 0
      %716 = vmatpush1.bf16.msra.mxu0 0
      %717 = vmatprep.subr.bf16.mxu0 0
      %718 = vmatpush1.bf16.msra.mxu0 0
      %719 = vmatprep.subr.bf16.mxu0 0
      %720 = vmatpush1.bf16.msra.mxu0 0
      %721 = vmatprep.mubr.bf16.mxu0 0
      %722 = vmatmul.mubr.bf16.gmra.mrb[0].mxu0 %v678
      %v723 = vpop.f32.mrb[0].mxu0
      %v724 = vadd.f32 0.0, %v723
      %v725 = vpop.f32.mrb[0].mxu0
      %v726 = vadd.f32 0.0, %v725
      %v727 = vpop.f32.mrb[0].mxu0
      %v728 = vpop.f32.mrb[0].mxu0
      %729 = vdwg.mxu0
      %730 = vmatprep.subr.bf16.mxu0 0
      %731 = vmatpush1.bf16.msra.mxu0 %v687
      %732 = vmatprep.subr.bf16.mxu0 0
      %733 = vmatpush1.bf16.msra.mxu0 0
      %734 = vmatprep.subr.bf16.mxu0 0
      %735 = vmatpush1.bf16.msra.mxu0 0
      %736 = vmatprep.subr.bf16.mxu0 0
      %737 = vmatpush1.bf16.msra.mxu0 0
      %738 = vmatprep.subr.bf16.mxu0 0
      %739 = vmatpush1.bf16.msra.mxu0 0
      %740 = vmatprep.subr.bf16.mxu0 0
      %741 = vmatpush1.bf16.msra.mxu0 0
      %742 = vmatprep.subr.bf16.mxu0 0
      %743 = vmatpush1.bf16.msra.mxu0 0
      %744 = vmatprep.subr.bf16.mxu0 0
      %745 = vmatpush1.bf16.msra.mxu0 0
      %746 = vmatprep.subr.bf16.mxu0 0
      %747 = vmatpush1.bf16.msra.mxu0 0
      %748 = vmatprep.subr.bf16.mxu0 0
      %749 = vmatpush1.bf16.msra.mxu0 0
      %750 = vmatprep.subr.bf16.mxu0 0
      %751 = vmatpush1.bf16.msra.mxu0 0
      %752 = vmatprep.subr.bf16.mxu0 0
      %753 = vmatpush1.bf16.msra.mxu0 0
      %754 = vmatprep.subr.bf16.mxu0 0
      %755 = vmatpush1.bf16.msra.mxu0 0
      %756 = vmatprep.subr.bf16.mxu0 0
      %757 = vmatpush1.bf16.msra.mxu0 0
      %758 = vmatprep.subr.bf16.mxu0 0
      %759 = vmatpush1.bf16.msra.mxu0 0
      %760 = vmatprep.subr.bf16.mxu0 0
      %761 = vmatpush1.bf16.msra.mxu0 0
      %762 = vmatprep.mubr.bf16.mxu0 0
      %763 = vmatmul.mubr.bf16.gmra.mrb[0].mxu0 %v678
      %v764 = vpop.f32.mrb[0].mxu0
      %v765 = vadd.f32 0.0, %v764
      %v766 = vpop.f32.mrb[0].mxu0
      %v767 = vpop.f32.mrb[0].mxu0
      %v768 = vpop.f32.mrb[0].mxu0
      %769 = vdwg.mxu0
      %v770 = vadd.f32 %v663, %v724
      %v771 = vadd.f32 %v664, %v726
      %v772 = vadd.f32 %v665, %v765
      %s773 = scalar_lea.vmem %s1, 20
      %v774 = vld [vmem:[%s773] sm:$0xf]
      %775 = vrot.lane.b32.xlu0 %v246, 108
      %v776 = vpop.permute.xlu0 %775
      %777 = vrot.lane.b32.xlu0 %v254, 108
      %v778 = vpop.permute.xlu0 %777
      %779 = vrot.lane.b32.xlu0 %v253, 108
      %v780 = vpop.permute.xlu0 %779
      %vm781 = vcmask 883712
      %v782 = vsel %vm781, %v776, %v778
      %v783 = vsel %vm781, %v778, %v780
      %v785 = vsel %vm264, %v774, 0
      %v788 = vsel %vm268, %v782, 0
      %v791 = vsel %vm268, %v783, 0
      %v794 = vsel %vm268, %v780, 0
      %796 = vmatprep.subr.bf16.mxu0 %v791
      %797 = vmatpush1.bf16.msra.mxu0 %v788
      %798 = vmatprep.subr.bf16.mxu0 0
      %799 = vmatpush1.bf16.msra.mxu0 0
      %800 = vmatprep.subr.bf16.mxu0 0
      %801 = vmatpush1.bf16.msra.mxu0 0
      %802 = vmatprep.subr.bf16.mxu0 0
      %803 = vmatpush1.bf16.msra.mxu0 0
      %804 = vmatprep.subr.bf16.mxu0 0
      %805 = vmatpush1.bf16.msra.mxu0 0
      %806 = vmatprep.subr.bf16.mxu0 0
      %807 = vmatpush1.bf16.msra.mxu0 0
      %808 = vmatprep.subr.bf16.mxu0 0
      %809 = vmatpush1.bf16.msra.mxu0 0
      %810 = vmatprep.subr.bf16.mxu0 0
      %811 = vmatpush1.bf16.msra.mxu0 0
      %812 = vmatprep.subr.bf16.mxu0 0
      %813 = vmatpush1.bf16.msra.mxu0 0
      %814 = vmatprep.subr.bf16.mxu0 0
      %815 = vmatpush1.bf16.msra.mxu0 0
      %816 = vmatprep.subr.bf16.mxu0 0
      %817 = vmatpush1.bf16.msra.mxu0 0
      %818 = vmatprep.subr.bf16.mxu0 0
      %819 = vmatpush1.bf16.msra.mxu0 0
      %820 = vmatprep.subr.bf16.mxu0 0
      %821 = vmatpush1.bf16.msra.mxu0 0
      %822 = vmatprep.subr.bf16.mxu0 0
      %823 = vmatpush1.bf16.msra.mxu0 0
      %824 = vmatprep.subr.bf16.mxu0 0
      %825 = vmatpush1.bf16.msra.mxu0 0
      %826 = vmatprep.subr.bf16.mxu0 0
      %827 = vmatpush1.bf16.msra.mxu0 0
      %828 = vmatprep.mubr.bf16.mxu0 0
      %829 = vmatmul.mubr.bf16.gmra.mrb[0].mxu0 %v785
      %v830 = vpop.f32.mrb[0].mxu0
      %v831 = vadd.f32 0.0, %v830
      %v832 = vpop.f32.mrb[0].mxu0
      %v833 = vadd.f32 0.0, %v832
      %v834 = vpop.f32.mrb[0].mxu0
      %v835 = vpop.f32.mrb[0].mxu0
      %836 = vdwg.mxu0
      %837 = vmatprep.subr.bf16.mxu0 0
      %838 = vmatpush1.bf16.msra.mxu0 %v794
      %839 = vmatprep.subr.bf16.mxu0 0
      %840 = vmatpush1.bf16.msra.mxu0 0
      %841 = vmatprep.subr.bf16.mxu0 0
      %842 = vmatpush1.bf16.msra.mxu0 0
      %843 = vmatprep.subr.bf16.mxu0 0
      %844 = vmatpush1.bf16.msra.mxu0 0
      %845 = vmatprep.subr.bf16.mxu0 0
      %846 = vmatpush1.bf16.msra.mxu0 0
      %847 = vmatprep.subr.bf16.mxu0 0
      %848 = vmatpush1.bf16.msra.mxu0 0
      %849 = vmatprep.subr.bf16.mxu0 0
      %850 = vmatpush1.bf16.msra.mxu0 0
      %851 = vmatprep.subr.bf16.mxu0 0
      %852 = vmatpush1.bf16.msra.mxu0 0
      %853 = vmatprep.subr.bf16.mxu0 0
      %854 = vmatpush1.bf16.msra.mxu0 0
      %855 = vmatprep.subr.bf16.mxu0 0
      %856 = vmatpush1.bf16.msra.mxu0 0
      %857 = vmatprep.subr.bf16.mxu0 0
      %858 = vmatpush1.bf16.msra.mxu0 0
      %859 = vmatprep.subr.bf16.mxu0 0
      %860 = vmatpush1.bf16.msra.mxu0 0
      %861 = vmatprep.subr.bf16.mxu0 0
      %862 = vmatpush1.bf16.msra.mxu0 0
      %863 = vmatprep.subr.bf16.mxu0 0
      %864 = vmatpush1.bf16.msra.mxu0 0
      %865 = vmatprep.subr.bf16.mxu0 0
      %866 = vmatpush1.bf16.msra.mxu0 0
      %867 = vmatprep.subr.bf16.mxu0 0
      %868 = vmatpush1.bf16.msra.mxu0 0
      %869 = vmatprep.mubr.bf16.mxu0 0
      %870 = vmatmul.mubr.bf16.gmra.mrb[0].mxu0 %v785
      %v871 = vpop.f32.mrb[0].mxu0
      %v872 = vadd.f32 0.0, %v871
      %v873 = vpop.f32.mrb[0].mxu0
      %v874 = vpop.f32.mrb[0].mxu0
      %v875 = vpop.f32.mrb[0].mxu0
      %876 = vdwg.mxu0
      %v877 = vadd.f32 %v770, %v831
      %v878 = vadd.f32 %v771, %v833
      %v879 = vadd.f32 %v772, %v872
      %s880 = scalar_lea.vmem %s1, 24
      %v881 = vld [vmem:[%s880] sm:$0xf]
      %882 = vrot.lane.b32.xlu0 %v246, 92
      %v883 = vpop.permute.xlu0 %882
      %884 = vrot.lane.b32.xlu0 %v254, 92
      %v885 = vpop.permute.xlu0 %884
      %886 = vrot.lane.b32.xlu0 %v253, 92
      %v887 = vpop.permute.xlu0 %886
      %vm888 = vcmask 752640
      %v889 = vsel %vm888, %v883, %v885
      %v890 = vsel %vm888, %v885, %v887
      %v892 = vsel %vm264, %v881, 0
      %v895 = vsel %vm268, %v889, 0
      %v898 = vsel %vm268, %v890, 0
      %v901 = vsel %vm268, %v887, 0
      %903 = vmatprep.subr.bf16.mxu0 %v898
      %904 = vmatpush1.bf16.msra.mxu0 %v895
      %905 = vmatprep.subr.bf16.mxu0 0
      %906 = vmatpush1.bf16.msra.mxu0 0
      %907 = vmatprep.subr.bf16.mxu0 0
      %908 = vmatpush1.bf16.msra.mxu0 0
      %909 = vmatprep.subr.bf16.mxu0 0
      %910 = vmatpush1.bf16.msra.mxu0 0
      %911 = vmatprep.subr.bf16.mxu0 0
      %912 = vmatpush1.bf16.msra.mxu0 0
      %913 = vmatprep.subr.bf16.mxu0 0
      %914 = vmatpush1.bf16.msra.mxu0 0
      %915 = vmatprep.subr.bf16.mxu0 0
      %916 = vmatpush1.bf16.msra.mxu0 0
      %917 = vmatprep.subr.bf16.mxu0 0
      %918 = vmatpush1.bf16.msra.mxu0 0
      %919 = vmatprep.subr.bf16.mxu0 0
      %920 = vmatpush1.bf16.msra.mxu0 0
      %921 = vmatprep.subr.bf16.mxu0 0
      %922 = vmatpush1.bf16.msra.mxu0 0
      %923 = vmatprep.subr.bf16.mxu0 0
      %924 = vmatpush1.bf16.msra.mxu0 0
      %925 = vmatprep.subr.bf16.mxu0 0
      %926 = vmatpush1.bf16.msra.mxu0 0
      %927 = vmatprep.subr.bf16.mxu0 0
      %928 = vmatpush1.bf16.msra.mxu0 0
      %929 = vmatprep.subr.bf16.mxu0 0
      %930 = vmatpush1.bf16.msra.mxu0 0
      %931 = vmatprep.subr.bf16.mxu0 0
      %932 = vmatpush1.bf16.msra.mxu0 0
      %933 = vmatprep.subr.bf16.mxu0 0
      %934 = vmatpush1.bf16.msra.mxu0 0
      %935 = vmatprep.mubr.bf16.mxu0 0
      %936 = vmatmul.mubr.bf16.gmra.mrb[0].mxu0 %v892
      %v937 = vpop.f32.mrb[0].mxu0
      %v938 = vadd.f32 0.0, %v937
      %v939 = vpop.f32.mrb[0].mxu0
      %v940 = vadd.f32 0.0, %v939
      %v941 = vpop.f32.mrb[0].mxu0
      %v942 = vpop.f32.mrb[0].mxu0
      %943 = vdwg.mxu0
      %944 = vmatprep.subr.bf16.mxu0 0
      %945 = vmatpush1.bf16.msra.mxu0 %v901
      %946 = vmatprep.subr.bf16.mxu0 0
      %947 = vmatpush1.bf16.msra.mxu0 0
      %948 = vmatprep.subr.bf16.mxu0 0
      %949 = vmatpush1.bf16.msra.mxu0 0
      %950 = vmatprep.subr.bf16.mxu0 0
      %951 = vmatpush1.bf16.msra.mxu0 0
      %952 = vmatprep.subr.bf16.mxu0 0
      %953 = vmatpush1.bf16.msra.mxu0 0
      %954 = vmatprep.subr.bf16.mxu0 0
      %955 = vmatpush1.bf16.msra.mxu0 0
      %956 = vmatprep.subr.bf16.mxu0 0
      %957 = vmatpush1.bf16.msra.mxu0 0
      %958 = vmatprep.subr.bf16.mxu0 0
      %959 = vmatpush1.bf16.msra.mxu0 0
      %960 = vmatprep.subr.bf16.mxu0 0
      %961 = vmatpush1.bf16.msra.mxu0 0
      %962 = vmatprep.subr.bf16.mxu0 0
      %963 = vmatpush1.bf16.msra.mxu0 0
      %964 = vmatprep.subr.bf16.mxu0 0
      %965 = vmatpush1.bf16.msra.mxu0 0
      %966 = vmatprep.subr.bf16.mxu0 0
      %967 = vmatpush1.bf16.msra.mxu0 0
      %968 = vmatprep.subr.bf16.mxu0 0
      %969 = vmatpush1.bf16.msra.mxu0 0
      %970 = vmatprep.subr.bf16.mxu0 0
      %971 = vmatpush1.bf16.msra.mxu0 0
      %972 = vmatprep.subr.bf16.mxu0 0
      %973 = vmatpush1.bf16.msra.mxu0 0
      %974 = vmatprep.subr.bf16.mxu0 0
      %975 = vmatpush1.bf16.msra.mxu0 0
      %976 = vmatprep.mubr.bf16.mxu0 0
      %977 = vmatmul.mubr.bf16.gmra.mrb[0].mxu0 %v892
      %v978 = vpop.f32.mrb[0].mxu0
      %v979 = vadd.f32 0.0, %v978
      %v980 = vpop.f32.mrb[0].mxu0
      %v981 = vpop.f32.mrb[0].mxu0
      %v982 = vpop.f32.mrb[0].mxu0
      %983 = vdwg.mxu0
      %v984 = vadd.f32 %v877, %v938
      %v985 = vadd.f32 %v878, %v940
      %v986 = vadd.f32 %v879, %v979
      %s987 = scalar_lea.vmem %s1, 28
      %v988 = vld [vmem:[%s987] sm:$0xf]
      %989 = vrot.lane.b32.xlu0 %v246, 91
      %v990 = vpop.permute.xlu0 %989
      %991 = vrot.lane.b32.xlu0 %v254, 91
      %v992 = vpop.permute.xlu0 %991
      %993 = vrot.lane.b32.xlu0 %v253, 91
      %v994 = vpop.permute.xlu0 %993
      %vm995 = vcmask 744448
      %v996 = vsel %vm995, %v990, %v992
      %v997 = vsel %vm995, %v992, %v994
      %v999 = vsel %vm264, %v988, 0
      %v1002 = vsel %vm268, %v996, 0
      %v1005 = vsel %vm268, %v997, 0
      %v1008 = vsel %vm268, %v994, 0
      %1010 = vmatprep.subr.bf16.mxu0 %v1005
      %1011 = vmatpush1.bf16.msra.mxu0 %v1002
      %1012 = vmatprep.subr.bf16.mxu0 0
      %1013 = vmatpush1.bf16.msra.mxu0 0
      %1014 = vmatprep.subr.bf16.mxu0 0
      %1015 = vmatpush1.bf16.msra.mxu0 0
      %1016 = vmatprep.subr.bf16.mxu0 0
      %1017 = vmatpush1.bf16.msra.mxu0 0
      %1018 = vmatprep.subr.bf16.mxu0 0
      %1019 = vmatpush1.bf16.msra.mxu0 0
      %1020 = vmatprep.subr.bf16.mxu0 0
      %1021 = vmatpush1.bf16.msra.mxu0 0
      %1022 = vmatprep.subr.bf16.mxu0 0
      %1023 = vmatpush1.bf16.msra.mxu0 0
      %1024 = vmatprep.subr.bf16.mxu0 0
      %1025 = vmatpush1.bf16.msra.mxu0 0
      %1026 = vmatprep.subr.bf16.mxu0 0
      %1027 = vmatpush1.bf16.msra.mxu0 0
      %1028 = vmatprep.subr.bf16.mxu0 0
      %1029 = vmatpush1.bf16.msra.mxu0 0
      %1030 = vmatprep.subr.bf16.mxu0 0
      %1031 = vmatpush1.bf16.msra.mxu0 0
      %1032 = vmatprep.subr.bf16.mxu0 0
      %1033 = vmatpush1.bf16.msra.mxu0 0
      %1034 = vmatprep.subr.bf16.mxu0 0
      %1035 = vmatpush1.bf16.msra.mxu0 0
      %1036 = vmatprep.subr.bf16.mxu0 0
      %1037 = vmatpush1.bf16.msra.mxu0 0
      %1038 = vmatprep.subr.bf16.mxu0 0
      %1039 = vmatpush1.bf16.msra.mxu0 0
      %1040 = vmatprep.subr.bf16.mxu0 0
      %1041 = vmatpush1.bf16.msra.mxu0 0
      %1042 = vmatprep.mubr.bf16.mxu0 0
      %1043 = vmatmul.mubr.bf16.gmra.mrb[0].mxu0 %v999
      %v1044 = vpop.f32.mrb[0].mxu0
      %v1045 = vadd.f32 0.0, %v1044
      %v1046 = vpop.f32.mrb[0].mxu0
      %v1047 = vadd.f32 0.0, %v1046
      %v1048 = vpop.f32.mrb[0].mxu0
      %v1049 = vpop.f32.mrb[0].mxu0
      %1050 = vdwg.mxu0
      %1051 = vmatprep.subr.bf16.mxu0 0
      %1052 = vmatpush1.bf16.msra.mxu0 %v1008
      %1053 = vmatprep.subr.bf16.mxu0 0
      %1054 = vmatpush1.bf16.msra.mxu0 0
      %1055 = vmatprep.subr.bf16.mxu0 0
      %1056 = vmatpush1.bf16.msra.mxu0 0
      %1057 = vmatprep.subr.bf16.mxu0 0
      %1058 = vmatpush1.bf16.msra.mxu0 0
      %1059 = vmatprep.subr.bf16.mxu0 0
      %1060 = vmatpush1.bf16.msra.mxu0 0
      %1061 = vmatprep.subr.bf16.mxu0 0
      %1062 = vmatpush1.bf16.msra.mxu0 0
      %1063 = vmatprep.subr.bf16.mxu0 0
      %1064 = vmatpush1.bf16.msra.mxu0 0
      %1065 = vmatprep.subr.bf16.mxu0 0
      %1066 = vmatpush1.bf16.msra.mxu0 0
      %1067 = vmatprep.subr.bf16.mxu0 0
      %1068 = vmatpush1.bf16.msra.mxu0 0
      %1069 = vmatprep.subr.bf16.mxu0 0
      %1070 = vmatpush1.bf16.msra.mxu0 0
      %1071 = vmatprep.subr.bf16.mxu0 0
      %1072 = vmatpush1.bf16.msra.mxu0 0
      %1073 = vmatprep.subr.bf16.mxu0 0
      %1074 = vmatpush1.bf16.msra.mxu0 0
      %1075 = vmatprep.subr.bf16.mxu0 0
      %1076 = vmatpush1.bf16.msra.mxu0 0
      %1077 = vmatprep.subr.bf16.mxu0 0
      %1078 = vmatpush1.bf16.msra.mxu0 0
      %1079 = vmatprep.subr.bf16.mxu0 0
      %1080 = vmatpush1.bf16.msra.mxu0 0
      %1081 = vmatprep.subr.bf16.mxu0 0
      %1082 = vmatpush1.bf16.msra.mxu0 0
      %1083 = vmatprep.mubr.bf16.mxu0 0
      %1084 = vmatmul.mubr.bf16.gmra.mrb[0].mxu0 %v999
      %v1085 = vpop.f32.mrb[0].mxu0
      %v1086 = vadd.f32 0.0, %v1085
      %v1087 = vpop.f32.mrb[0].mxu0
      %v1088 = vpop.f32.mrb[0].mxu0
      %v1089 = vpop.f32.mrb[0].mxu0
      %1090 = vdwg.mxu0
      %v1091 = vadd.f32 %v984, %v1045
      %v1092 = vadd.f32 %v985, %v1047
      %v1093 = vadd.f32 %v986, %v1086
      %s1094 = scalar_lea.vmem %s1, 32
      %v1095 = vld [vmem:[%s1094] sm:$0xf]
      %1096 = vrot.lane.b32.xlu0 %v246, 90
      %v1097 = vpop.permute.xlu0 %1096
      %1098 = vrot.lane.b32.xlu0 %v254, 90
      %v1099 = vpop.permute.xlu0 %1098
      %1100 = vrot.lane.b32.xlu0 %v253, 90
      %v1101 = vpop.permute.xlu0 %1100
      %vm1102 = vcmask 736256
      %v1103 = vsel %vm1102, %v1097, %v1099
      %v1104 = vsel %vm1102, %v1099, %v1101
      %v1106 = vsel %vm264, %v1095, 0
      %v1109 = vsel %vm268, %v1103, 0
      %v1112 = vsel %vm268, %v1104, 0
      %v1115 = vsel %vm268, %v1101, 0
      %1117 = vmatprep.subr.bf16.mxu0 %v1112
      %1118 = vmatpush1.bf16.msra.mxu0 %v1109
      %1119 = vmatprep.subr.bf16.mxu0 0
      %1120 = vmatpush1.bf16.msra.mxu0 0
      %1121 = vmatprep.subr.bf16.mxu0 0
      %1122 = vmatpush1.bf16.msra.mxu0 0
      %1123 = vmatprep.subr.bf16.mxu0 0
      %1124 = vmatpush1.bf16.msra.mxu0 0
      %1125 = vmatprep.subr.bf16.mxu0 0
      %1126 = vmatpush1.bf16.msra.mxu0 0
      %1127 = vmatprep.subr.bf16.mxu0 0
      %1128 = vmatpush1.bf16.msra.mxu0 0
      %1129 = vmatprep.subr.bf16.mxu0 0
      %1130 = vmatpush1.bf16.msra.mxu0 0
      %1131 = vmatprep.subr.bf16.mxu0 0
      %1132 = vmatpush1.bf16.msra.mxu0 0
      %1133 = vmatprep.subr.bf16.mxu0 0
      %1134 = vmatpush1.bf16.msra.mxu0 0
      %1135 = vmatprep.subr.bf16.mxu0 0
      %1136 = vmatpush1.bf16.msra.mxu0 0
      %1137 = vmatprep.subr.bf16.mxu0 0
      %1138 = vmatpush1.bf16.msra.mxu0 0
      %1139 = vmatprep.subr.bf16.mxu0 0
      %1140 = vmatpush1.bf16.msra.mxu0 0
      %1141 = vmatprep.subr.bf16.mxu0 0
      %1142 = vmatpush1.bf16.msra.mxu0 0
      %1143 = vmatprep.subr.bf16.mxu0 0
      %1144 = vmatpush1.bf16.msra.mxu0 0
      %1145 = vmatprep.subr.bf16.mxu0 0
      %1146 = vmatpush1.bf16.msra.mxu0 0
      %1147 = vmatprep.subr.bf16.mxu0 0
      %1148 = vmatpush1.bf16.msra.mxu0 0
      %1149 = vmatprep.mubr.bf16.mxu0 0
      %1150 = vmatmul.mubr.bf16.gmra.mrb[0].mxu0 %v1106
      %v1151 = vpop.f32.mrb[0].mxu0
      %v1152 = vadd.f32 0.0, %v1151
      %v1153 = vpop.f32.mrb[0].mxu0
      %v1154 = vadd.f32 0.0, %v1153
      %v1155 = vpop.f32.mrb[0].mxu0
      %v1156 = vpop.f32.mrb[0].mxu0
      %1157 = vdwg.mxu0
      %1158 = vmatprep.subr.bf16.mxu0 0
      %1159 = vmatpush1.bf16.msra.mxu0 %v1115
      %1160 = vmatprep.subr.bf16.mxu0 0
      %1161 = vmatpush1.bf16.msra.mxu0 0
      %1162 = vmatprep.subr.bf16.mxu0 0
      %1163 = vmatpush1.bf16.msra.mxu0 0
      %1164 = vmatprep.subr.bf16.mxu0 0
      %1165 = vmatpush1.bf16.msra.mxu0 0
      %1166 = vmatprep.subr.bf16.mxu0 0
      %1167 = vmatpush1.bf16.msra.mxu0 0
      %1168 = vmatprep.subr.bf16.mxu0 0
      %1169 = vmatpush1.bf16.msra.mxu0 0
      %1170 = vmatprep.subr.bf16.mxu0 0
      %1171 = vmatpush1.bf16.msra.mxu0 0
      %1172 = vmatprep.subr.bf16.mxu0 0
      %1173 = vmatpush1.bf16.msra.mxu0 0
      %1174 = vmatprep.subr.bf16.mxu0 0
      %1175 = vmatpush1.bf16.msra.mxu0 0
      %1176 = vmatprep.subr.bf16.mxu0 0
      %1177 = vmatpush1.bf16.msra.mxu0 0
      %1178 = vmatprep.subr.bf16.mxu0 0
      %1179 = vmatpush1.bf16.msra.mxu0 0
      %1180 = vmatprep.subr.bf16.mxu0 0
      %1181 = vmatpush1.bf16.msra.mxu0 0
      %1182 = vmatprep.subr.bf16.mxu0 0
      %1183 = vmatpush1.bf16.msra.mxu0 0
      %1184 = vmatprep.subr.bf16.mxu0 0
      %1185 = vmatpush1.bf16.msra.mxu0 0
      %1186 = vmatprep.subr.bf16.mxu0 0
      %1187 = vmatpush1.bf16.msra.mxu0 0
      %1188 = vmatprep.subr.bf16.mxu0 0
      %1189 = vmatpush1.bf16.msra.mxu0 0
      %1190 = vmatprep.mubr.bf16.mxu0 0
      %1191 = vmatmul.mubr.bf16.gmra.mrb[0].mxu0 %v1106
      %v1192 = vpop.f32.mrb[0].mxu0
      %v1193 = vadd.f32 0.0, %v1192
      %v1194 = vpop.f32.mrb[0].mxu0
      %v1195 = vpop.f32.mrb[0].mxu0
      %v1196 = vpop.f32.mrb[0].mxu0
      %1197 = vdwg.mxu0
      %v1198 = vadd.f32 %v1091, %v1152
      %v1199 = vadd.f32 %v1092, %v1154
      %v1200 = vadd.f32 %v1093, %v1193
      %v1201 = vld [vmem:[%s2] sm:$0x7]
      %v1203 = vlaneseq
      %v1204 = vshrl.u32 %v1203, 7
      %v1205 = vsub.s32 0, %v1204
      %v1206 = vrot.slane %v1201, %v1205
      %v1207 = vlaneseq
      %v1208 = vshrl.u32 %v1207, 7
      %v1209 = vsub.s32 1, %v1208
      %v1210 = vrot.slane %v1201, %v1209
      %v1211 = vlaneseq
      %v1212 = vshrl.u32 %v1211, 7
      %v1213 = vsub.s32 2, %v1212
      %v1214 = vrot.slane %v1201, %v1213
      %v1218 = vmul.f32 %v1198, %v1206
      %v1219 = vmul.f32 %v1199, %v1210
      %v1220 = vmul.f32 %v1200, %v1214
      %v1221 = vld [vmem:[%s221] sm:$0xff]
      %v1222 = vadd.f32 %v1218, %v1219
      %vm1223 = vcmask 556032
      %v1224 = vsel %vm1223, %v1220, 0.0
      %v1225 = vadd.f32 %v1222, %v1224
      %1226 = vadd.xlane.f32.xlu0 %v1225
      %v1227 = vpop.xlane.xlu0 %1226
      %v1228 = vadd.f32 %v1221, %v1227
      %vm1229 = vcmask 7168
      %1230 = vst.msk [vmem:[%s221] sm:$0xff] %vm1229, %v1228
      %v1231 = vld [vmem:[%s225] sm:$0xff]
      %v1232 = vmul.f32 %v1218, %v1218
      %v1233 = vmul.f32 %v1219, %v1219
      %v1234 = vmul.f32 %v1220, %v1220
      %v1235 = vadd.f32 %v1232, %v1233
      %v1236 = vsel %vm1223, %v1234, 0.0
      %v1237 = vadd.f32 %v1235, %v1236
      %1238 = vadd.xlane.f32.xlu0 %v1237
      %v1239 = vpop.xlane.xlu0 %1238
      %v1240 = vadd.f32 %v1231, %v1239
      %1241 = vst.msk [vmem:[%s225] sm:$0xff] %vm1229, %v1240
      %p1242 = scmp.lt.s32.totalorder %s20, 1
      %s1243 = scalar_select %p1242, %s20, 1
      %s1244 = smul.addr %s1243, 8
      %s1245 = scalar_lea.vmem %s3, %s1244
      %p1246 = scmp.lt.s32.totalorder %s20, 1
      %s1247 = scalar_select %p1246, %s20, 1
      %s1248 = smul.addr %s1247, 8
      %s1249 = scalar_lea.vmem %s4, %s1248
      // Predicated region
      $region37: #{conv_bn_mish.2} parent=31 // pred_check
        %p1250 = pneg %p116
      $region38: #{conv_bn_mish.2} parent=31 // pred_check_branch
        %1252 = sbr.rel (%p1250) target = $region40
      $region39: #{conv_bn_mish.2} parent=31 // pred_region
        _
      $region40: #{conv_bn_mish.2} parent=31 // pred_fallthru
        _
      // Predicated region
      $region41: #{conv_bn_mish.2} parent=31 // pred_check
        %p1253 = pneg %p142
      $region42: #{conv_bn_mish.2} parent=31 // pred_check_branch
        %1255 = sbr.rel (%p1253) target = $region44
      $region43: #{conv_bn_mish.2} parent=31 // pred_region
        _
      $region44: #{conv_bn_mish.2} parent=31 // pred_fallthru
        _
    $region32: #{conv_bn_mish.2} parent=5 // pred_fallthru
      _
    %p1256 = scmp.le.s32.totalorder 2, %s11
    // Predicated region
    $region45: #{conv_bn_mish.2} parent=5 // pred_check
      %p1257 = pneg %p1256
    $region46: #{conv_bn_mish.2} parent=5 // pred_check_branch
      %1259 = sbr.rel (%p1257) target = $region48
    $region47: #{conv_bn_mish.2} parent=5 // pred_region
      %s1260 = ssub.s32 %s11, 2
      // Predicated region
      $region49: #{conv_bn_mish.2} parent=47 // pred_check
        %p1261 = pneg %p122
      $region50: #{conv_bn_mish.2} parent=47 // pred_check_branch
        %1263 = sbr.rel (%p1261) target = $region52
      $region51: #{conv_bn_mish.2} parent=47 // pred_region
        %p1264 = scmp.lt.s32.totalorder %s22, 1
        %s1265 = scalar_select %p1264, %s22, 1
        %s1266 = smul.addr %s1265, 8
        %s1267 = scalar_lea.vmem %s3, %s1266
      $region52: #{conv_bn_mish.2} parent=47 // pred_fallthru
        _
      // Predicated region
      $region53: #{conv_bn_mish.2} parent=47 // pred_check
        %p1268 = pneg %p148
      $region54: #{conv_bn_mish.2} parent=47 // pred_check_branch
        %1270 = sbr.rel (%p1268) target = $region56
      $region55: #{conv_bn_mish.2} parent=47 // pred_region
        %p1271 = scmp.lt.s32.totalorder %s22, 1
        %s1272 = scalar_select %p1271, %s22, 1
        %s1273 = smul.addr %s1272, 8
        %s1274 = scalar_lea.vmem %s4, %s1273
      $region56: #{conv_bn_mish.2} parent=47 // pred_fallthru
        _
    $region48: #{conv_bn_mish.2} parent=5 // pred_fallthru
      _
  $region6: #{conv_bn_mish.2} parent=0 // loop_footer
    %s15 = sadd.s32 1, %s11
  $region7: #{conv_bn_mish.2} parent=0 // loop_footer_branch
    %10 = sbr.rel target = $region3
  $region8: #{conv_bn_mish.2} parent=0 // loop_exit
    _

// kernel: conv_bn_mish.3
$region0: #{conv_bn_mish.3}
  #allocation0 [shape = 'u32[]', space=smem, size = 0x4, offset = 0x4, fixed_abs, tag = 'smem constant byte address 0x4 - core index']
  #allocation1 [shape = 'u32[144,128]{1,0:T(1,128)}', space=vmem, size = 0x12000, scoped, tag = 'internal scratch']
  %s0 = inlined_call_operand.vmem [shape: bf16[2,4,378], index: 0, kind: input, shape index: {}]
  %s1 = inlined_call_operand.vmem [shape: bf16[9,8,4], index: 1, kind: input, shape index: {}]
  %s2 = inlined_call_operand.vmem [shape: f32[8,1], index: 2, kind: input, shape index: {}]
  %s3 = inlined_call_operand.vmem [shape: f32[8,1], index: 3, kind: input, shape index: {}]
  %s4 = inlined_call_operand.vmem [shape: f32[2,8,324], index: 4, kind: output, shape index: {}]
  %s5 = sld [smem:[#allocation0]]
  $region49: #{conv_bn_mish.3} parent=0
    _
  %s7 = ssub.s32 1, %s5
  %s8 = scalar_select 0, %s7, %s5
  loop: start=0, step=1, limit=4
  $region2: #{conv_bn_mish.3} parent=0 // loop_pre_header
    _
  $region3: #{conv_bn_mish.3} parent=0 // loop_header
    %s10 = sphi 0, %s14
    %p11 = scmp.ge.s32.totalorder %s10, 4
    %s20 = sphi 0, %s22
    %s23 = sphi 0, %s20
    %s24 = sphi 0, %s23
    %s40 = sphi 0, %s24
    %s44 = sphi 0, %s44
    %s46 = sphi 0, %s44
    %s47 = sphi 0, %s46
    %s61 = sphi 0, %s47
    %s65 = sphi 0, %s65
    %s67 = sphi 0, %s65
    %s68 = sphi 0, %s67
    %s82 = sphi 0, %s68
    %s86 = sphi 0, %s86
    %s88 = sphi 0, %s86
    %s89 = sphi 0, %s88
    %s103 = sphi 0, %s89
    %s109 = sphi 0, %s111
    %s112 = sphi 0, %s109
    %s113 = sphi 0, %s112
    %s129 = sphi 0, %s113
  $region4: #{conv_bn_mish.3} parent=0 // loop_header_branch
    %13 = sbr.rel (%p11) target = $region8
  $region5: #{conv_bn_mish.3} parent=0 // loop_body
    %s15 = ssub.s32 %s10, 1
    %s16 = ssub.s32 %s10, 2
    %s17 = sadd.s32 %s10, 1
    %s18 = ssub.s32 %s10, %s17
    %p19 = scmp.eq.s32.totalorder %s18, 0
    %s21 = sadd.s32 %s20, 1
    %s22 = scalar_select %p19, %s20, %s21
    %p25 = pneg %p19
    %p26 = scmp.eq.s32.totalorder %s10, 1
    %p27 = por %p25, %p26
    %p28 = scmp.ne.s32.totalorder %s20, %s23
    %p29 = scmp.eq.s32.totalorder %s10, 0
    %p30 = por %p28, %p29
    %p31 = scmp.ne.s32.totalorder %s20, %s23
    %p32 = scmp.eq.s32.totalorder %s15, 1
    %p33 = por %p31, %p32
    %p34 = scmp.ne.s32.totalorder %s23, %s24
    %p35 = scmp.eq.s32.totalorder %s15, 0
    %p36 = por %p34, %p35
    %p37 = scmp.ne.s32.totalorder %s23, %s24
    %p38 = scmp.eq.s32.totalorder %s16, 1
    %p39 = por %p37, %p38
    %p41 = scmp.ne.s32.totalorder %s24, %s40
    %p42 = scmp.eq.s32.totalorder %s16, 0
    %p43 = por %p41, %p42
    %s45 = sadd.s32 %s44, 1
    %p48 = scmp.eq.s32.totalorder %s10, 1
    %p49 = scmp.ne.s32.totalorder %s44, %s46
    %p50 = scmp.eq.s32.totalorder %s10, 0
    %p51 = por %p49, %p50
    %p52 = scmp.ne.s32.totalorder %s44, %s46
    %p53 = scmp.eq.s32.totalorder %s15, 1
    %p54 = por %p52, %p53
    %p55 = scmp.ne.s32.totalorder %s46, %s47
    %p56 = scmp.eq.s32.totalorder %s15, 0
    %p57 = por %p55, %p56
    %p58 = scmp.ne.s32.totalorder %s46, %s47
    %p59 = scmp.eq.s32.totalorder %s16, 1
    %p60 = por %p58, %p59
    %p62 = scmp.ne.s32.totalorder %s47, %s61
    %p63 = scmp.eq.s32.totalorder %s16, 0
    %p64 = por %p62, %p63
    %s66 = sadd.s32 %s65, 1
    %p69 = scmp.eq.s32.totalorder %s10, 1
    %p70 = scmp.ne.s32.totalorder %s65, %s67
    %p71 = scmp.eq.s32.totalorder %s10, 0
    %p72 = por %p70, %p71
    %p73 = scmp.ne.s32.totalorder %s65, %s67
    %p74 = scmp.eq.s32.totalorder %s15, 1
    %p75 = por %p73, %p74
    %p76 = scmp.ne.s32.totalorder %s67, %s68
    %p77 = scmp.eq.s32.totalorder %s15, 0
    %p78 = por %p76, %p77
    %p79 = scmp.ne.s32.totalorder %s67, %s68
    %p80 = scmp.eq.s32.totalorder %s16, 1
    %p81 = por %p79, %p80
    %p83 = scmp.ne.s32.totalorder %s68, %s82
    %p84 = scmp.eq.s32.totalorder %s16, 0
    %p85 = por %p83, %p84
    %s87 = sadd.s32 %s86, 1
    %p90 = scmp.eq.s32.totalorder %s10, 1
    %p91 = scmp.ne.s32.totalorder %s86, %s88
    %p92 = scmp.eq.s32.totalorder %s10, 0
    %p93 = por %p91, %p92
    %p94 = scmp.ne.s32.totalorder %s86, %s88
    %p95 = scmp.eq.s32.totalorder %s15, 1
    %p96 = por %p94, %p95
    %p97 = scmp.ne.s32.totalorder %s88, %s89
    %p98 = scmp.eq.s32.totalorder %s15, 0
    %p99 = por %p97, %p98
    %p100 = scmp.ne.s32.totalorder %s88, %s89
    %p101 = scmp.eq.s32.totalorder %s16, 1
    %p102 = por %p100, %p101
    %p104 = scmp.ne.s32.totalorder %s89, %s103
    %p105 = scmp.eq.s32.totalorder %s16, 0
    %p106 = por %p104, %p105
    %s107 = ssub.s32 %s10, %s17
    %p108 = scmp.eq.s32.totalorder %s107, 0
    %s110 = sadd.s32 %s109, 1
    %s111 = scalar_select %p108, %s109, %s110
    %p114 = pneg %p108
    %p115 = scmp.eq.s32.totalorder %s10, 1
    %p116 = por %p114, %p115
    %p117 = scmp.ne.s32.totalorder %s109, %s112
    %p118 = scmp.eq.s32.totalorder %s10, 0
    %p119 = por %p117, %p118
    %p120 = scmp.ne.s32.totalorder %s109, %s112
    %p121 = scmp.eq.s32.totalorder %s15, 1
    %p122 = por %p120, %p121
    %p123 = scmp.ne.s32.totalorder %s112, %s113
    %p124 = scmp.eq.s32.totalorder %s15, 0
    %p125 = por %p123, %p124
    %p126 = scmp.ne.s32.totalorder %s112, %s113
    %p127 = scmp.eq.s32.totalorder %s16, 1
    %p128 = por %p126, %p127
    %p130 = scmp.ne.s32.totalorder %s113, %s129
    %p131 = scmp.eq.s32.totalorder %s16, 0
    %p132 = por %p130, %p131
    %p133 = scmp.le.s32.totalorder 1, %s10
    %p134 = scmp.lt.s32.totalorder %s10, 3
    %p135 = pnand %p133, %p134
    %p136 = pneg %p135
    // Predicated region
    $region9: #{conv_bn_mish.3} parent=5 // pred_check
      _
    $region10: #{conv_bn_mish.3} parent=5 // pred_check_branch
      %138 = sbr.rel (%p135) target = $region12
    $region11: #{conv_bn_mish.3} parent=5 // pred_region
      %s139 = ssub.s32 %s10, 1
      // Predicated region
      $region13: #{conv_bn_mish.3} parent=11 // pred_check
        %p140 = pneg %p57
      $region14: #{conv_bn_mish.3} parent=11 // pred_check_branch
        %142 = sbr.rel (%p140) target = $region16
      $region15: #{conv_bn_mish.3} parent=11 // pred_region
        _
      $region16: #{conv_bn_mish.3} parent=11 // pred_fallthru
        _
      // Predicated region
      $region17: #{conv_bn_mish.3} parent=11 // pred_check
        %p143 = pneg %p78
      $region18: #{conv_bn_mish.3} parent=11 // pred_check_branch
        %145 = sbr.rel (%p143) target = $region20
      $region19: #{conv_bn_mish.3} parent=11 // pred_region
        _
      $region20: #{conv_bn_mish.3} parent=11 // pred_fallthru
        _
      // Predicated region
      $region21: #{conv_bn_mish.3} parent=11 // pred_check
        %p146 = pneg %p99
      $region22: #{conv_bn_mish.3} parent=11 // pred_check_branch
        %148 = sbr.rel (%p146) target = $region24
      $region23: #{conv_bn_mish.3} parent=11 // pred_region
        _
      $region24: #{conv_bn_mish.3} parent=11 // pred_fallthru
        _
    $region12: #{conv_bn_mish.3} parent=5 // pred_fallthru
      _
    %p149 = scmp.lt.s32.totalorder %s10, 2
    // Predicated region
    $region25: #{conv_bn_mish.3} parent=5 // pred_check
      %p150 = pneg %p149
    $region26: #{conv_bn_mish.3} parent=5 // pred_check_branch
      %152 = sbr.rel (%p150) target = $region28
    $region27: #{conv_bn_mish.3} parent=5 // pred_region
      // Predicated region
      $region29: #{conv_bn_mish.3} parent=27 // pred_check
        %p153 = pneg %p30
      $region30: #{conv_bn_mish.3} parent=27 // pred_check_branch
        %155 = sbr.rel (%p153) target = $region32
      $region31: #{conv_bn_mish.3} parent=27 // pred_region
        %p156 = scmp.lt.s32.totalorder %s10, 1
        %s157 = scalar_select %p156, %s10, 1
        %s158 = smul.addr %s157, 3
        %s159 = smul.addr %s158, 2
        %s160 = scalar_lea.vmem %s0, %s159
      $region32: #{conv_bn_mish.3} parent=27 // pred_fallthru
        _
    $region28: #{conv_bn_mish.3} parent=5 // pred_fallthru
      _
    %p161 = scmp.le.s32.totalorder 1, %s10
    %p162 = scmp.lt.s32.totalorder %s10, 3
    %p163 = pnand %p161, %p162
    %p164 = pneg %p163
    // Predicated region
    $region33: #{conv_bn_mish.3} parent=5 // pred_check
      _
    $region34: #{conv_bn_mish.3} parent=5 // pred_check_branch
      %166 = sbr.rel (%p163) target = $region36
    $region35: #{conv_bn_mish.3} parent=5 // pred_region
      %s167 = ssub.s32 %s10, 1
      %p168 = scmp.lt.s32.totalorder %s15, 1
      %s169 = scalar_select %p168, %s15, 1
      %s170 = smul.addr %s169, 3
      %s171 = smul.addr %s170, 2
      %s172 = scalar_lea.vmem %s0, %s171
      %p173 = pneg %p36
      %p174 = pneg %p33
      %p175 = pneg %p57
      %p176 = pneg %p54
      %p177 = pneg %p78
      %p178 = pneg %p75
      %p179 = pneg %p99
      %p180 = pneg %p96
      %p181 = pneg %p125
      %p182 = pneg %p122
      %p183 = scmp.lt.s32.totalorder %s15, 1
      %s184 = scalar_select %p183, %s15, 1
      %s185 = smul.addr %s184, 3
      %s186 = smul.addr %s185, 8
      %s187 = scalar_lea.vmem %s4, %s186
      %p188 = scmp.lt.s32.totalorder %s15, 1
      %s189 = scalar_select %p188, %s15, 1
      %s190 = smul.addr %s189, 3
      %s191 = smul.addr %s190, 2
      %s192 = scalar_lea.vmem %s0, %s191
      %p193 = scmp.lt.s32.totalorder %s15, 1
      %s194 = scalar_select %p193, %s15, 1
      %s195 = smul.addr %s194, 3
      %s196 = smul.addr %s195, 8
      %s197 = scalar_lea.vmem %s4, %s196
      %v199 = vld [vmem:[%s192] sm:$0x3f]
      %v200 = vld [vmem:[%s1] sm:$0xf]
      %s201 = scalar_lea.vmem %s1, 4
      %v202 = vld [vmem:[%s201] sm:$0xf]
      %v204 = vcombine.high %v199, %v199
      %v206 = vunpack.c.l.s4 1983009808
      %v207 = vunpack.c.0.s8 %v206
      %v208 = vlaneseq
      %v209 = vshrl.u32 %v208, 7
      %v210 = vsub.s32 %v207, %v209
      %v211 = vrot.slane %v199, %v210
      %v213 = vunpack.c.l.s4 1983009808
      %v214 = vunpack.c.0.s8 %v213
      %v215 = vlaneseq
      %v216 = vshrl.u32 %v215, 7
      %v217 = vsub.s32 %v214, %v216
      %v218 = vrot.slane %v204, %v217
      %v219 = vcombine.high %v211, %v211
      %220 = vrot.lane.b32.xlu0 %v211, 127
      %v221 = vpop.permute.xlu0 %220
      %222 = vrot.lane.b32.xlu0 %v219, 127
      %v223 = vpop.permute.xlu0 %222
      %224 = vrot.lane.b32.xlu0 %v218, 127
      %v225 = vpop.permute.xlu0 %224
      %vm226 = vcmask 1039360
      %v227 = vsel %vm226, %v221, %v223
      %v228 = vsel %vm226, %v223, %v225
      %vm229 = vcmask 31744
      %v231 = vsel %vm229, %v202, 0
      %vm233 = vcmask 1041408
      %v235 = vsel %vm233, %v227, 0
      %v238 = vsel %vm233, %v228, 0
      %v241 = vsel %vm233, %v225, 0
      %243 = vmatprep.subr.bf16.mxu0 %v238
      %244 = vmatpush1.bf16.msra.mxu0 %v235
      %245 = vmatprep.subr.bf16.mxu0 0
      %246 = vmatpush1.bf16.msra.mxu0 0
      %247 = vmatprep.subr.bf16.mxu0 0
      %248 = vmatpush1.bf16.msra.mxu0 0
      %249 = vmatprep.subr.bf16.mxu0 0
      %250 = vmatpush1.bf16.msra.mxu0 0
      %251 = vmatprep.subr.bf16.mxu0 0
      %252 = vmatpush1.bf16.msra.mxu0 0
      %253 = vmatprep.subr.bf16.mxu0 0
      %254 = vmatpush1.bf16.msra.mxu0 0
      %255 = vmatprep.subr.bf16.mxu0 0
      %256 = vmatpush1.bf16.msra.mxu0 0
      %257 = vmatprep.subr.bf16.mxu0 0
      %258 = vmatpush1.bf16.msra.mxu0 0
      %259 = vmatprep.subr.bf16.mxu0 0
      %260 = vmatpush1.bf16.msra.mxu0 0
      %261 = vmatprep.subr.bf16.mxu0 0
      %262 = vmatpush1.bf16.msra.mxu0 0
      %263 = vmatprep.subr.bf16.mxu0 0
      %264 = vmatpush1.bf16.msra.mxu0 0
      %265 = vmatprep.subr.bf16.mxu0 0
      %266 = vmatpush1.bf16.msra.mxu0 0
      %267 = vmatprep.subr.bf16.mxu0 0
      %268 = vmatpush1.bf16.msra.mxu0 0
      %269 = vmatprep.subr.bf16.mxu0 0
      %270 = vmatpush1.bf16.msra.mxu0 0
      %271 = vmatprep.subr.bf16.mxu0 0
      %272 = vmatpush1.bf16.msra.mxu0 0
      %273 = vmatprep.subr.bf16.mxu0 0
      %274 = vmatpush1.bf16.msra.mxu0 0
      %275 = vmatprep.mubr.bf16.mxu0 0
      %276 = vmatmul.mubr.bf16.gmra.mrb[0].mxu0 %v231
      %v277 = vpop.f32.mrb[0].mxu0
      %v278 = vadd.f32 0.0, %v277
      %v279 = vpop.f32.mrb[0].mxu0
      %v280 = vadd.f32 0.0, %v279
      %v281 = vpop.f32.mrb[0].mxu0
      %v282 = vpop.f32.mrb[0].mxu0
      %283 = vdwg.mxu0
      %284 = vmatprep.subr.bf16.mxu0 0
      %285 = vmatpush1.bf16.msra.mxu0 %v241
      %286 = vmatprep.subr.bf16.mxu0 0
      %287 = vmatpush1.bf16.msra.mxu0 0
      %288 = vmatprep.subr.bf16.mxu0 0
      %289 = vmatpush1.bf16.msra.mxu0 0
      %290 = vmatprep.subr.bf16.mxu0 0
      %291 = vmatpush1.bf16.msra.mxu0 0
      %292 = vmatprep.subr.bf16.mxu0 0
      %293 = vmatpush1.bf16.msra.mxu0 0
      %294 = vmatprep.subr.bf16.mxu0 0
      %295 = vmatpush1.bf16.msra.mxu0 0
      %296 = vmatprep.subr.bf16.mxu0 0
      %297 = vmatpush1.bf16.msra.mxu0 0
      %298 = vmatprep.subr.bf16.mxu0 0
      %299 = vmatpush1.bf16.msra.mxu0 0
      %300 = vmatprep.subr.bf16.mxu0 0
      %301 = vmatpush1.bf16.msra.mxu0 0
      %302 = vmatprep.subr.bf16.mxu0 0
      %303 = vmatpush1.bf16.msra.mxu0 0
      %304 = vmatprep.subr.bf16.mxu0 0
      %305 = vmatpush1.bf16.msra.mxu0 0
      %306 = vmatprep.subr.bf16.mxu0 0
      %307 = vmatpush1.bf16.msra.mxu0 0
      %308 = vmatprep.subr.bf16.mxu0 0
      %309 = vmatpush1.bf16.msra.mxu0 0
      %310 = vmatprep.subr.bf16.mxu0 0
      %311 = vmatpush1.bf16.msra.mxu0 0
      %312 = vmatprep.subr.bf16.mxu0 0
      %313 = vmatpush1.bf16.msra.mxu0 0
      %314 = vmatprep.subr.bf16.mxu0 0
      %315 = vmatpush1.bf16.msra.mxu0 0
      %316 = vmatprep.mubr.bf16.mxu0 0
      %317 = vmatmul.mubr.bf16.gmra.mrb[0].mxu0 %v231
      %v318 = vpop.f32.mrb[0].mxu0
      %v319 = vadd.f32 0.0, %v318
      %v320 = vpop.f32.mrb[0].mxu0
      %v321 = vpop.f32.mrb[0].mxu0
      %v322 = vpop.f32.mrb[0].mxu0
      %323 = vdwg.mxu0
      %v325 = vsel %vm229, %v200, 0
      %v328 = vsel %vm233, %v211, 0
      %v331 = vsel %vm233, %v219, 0
      %v334 = vsel %vm233, %v218, 0
      %336 = vmatprep.subr.bf16.mxu0 %v331
      %337 = vmatpush1.bf16.msra.mxu0 %v328
      %338 = vmatprep.subr.bf16.mxu0 0
      %339 = vmatpush1.bf16.msra.mxu0 0
      %340 = vmatprep.subr.bf16.mxu0 0
      %341 = vmatpush1.bf16.msra.mxu0 0
      %342 = vmatprep.subr.bf16.mxu0 0
      %343 = vmatpush1.bf16.msra.mxu0 0
      %344 = vmatprep.subr.bf16.mxu0 0
      %345 = vmatpush1.bf16.msra.mxu0 0
      %346 = vmatprep.subr.bf16.mxu0 0
      %347 = vmatpush1.bf16.msra.mxu0 0
      %348 = vmatprep.subr.bf16.mxu0 0
      %349 = vmatpush1.bf16.msra.mxu0 0
      %350 = vmatprep.subr.bf16.mxu0 0
      %351 = vmatpush1.bf16.msra.mxu0 0
      %352 = vmatprep.subr.bf16.mxu0 0
      %353 = vmatpush1.bf16.msra.mxu0 0
      %354 = vmatprep.subr.bf16.mxu0 0
      %355 = vmatpush1.bf16.msra.mxu0 0
      %356 = vmatprep.subr.bf16.mxu0 0
      %357 = vmatpush1.bf16.msra.mxu0 0
      %358 = vmatprep.subr.bf16.mxu0 0
      %359 = vmatpush1.bf16.msra.mxu0 0
      %360 = vmatprep.subr.bf16.mxu0 0
      %361 = vmatpush1.bf16.msra.mxu0 0
      %362 = vmatprep.subr.bf16.mxu0 0
      %363 = vmatpush1.bf16.msra.mxu0 0
      %364 = vmatprep.subr.bf16.mxu0 0
      %365 = vmatpush1.bf16.msra.mxu0 0
      %366 = vmatprep.subr.bf16.mxu0 0
      %367 = vmatpush1.bf16.msra.mxu0 0
      %368 = vmatprep.mubr.bf16.mxu0 0
      %369 = vmatmul.mubr.bf16.gmra.mrb[0].mxu0 %v325
      %v370 = vpop.f32.mrb[0].mxu0
      %v371 = vadd.f32 %v278, %v370
      %v372 = vpop.f32.mrb[0].mxu0
      %v373 = vadd.f32 %v280, %v372
      %v374 = vpop.f32.mrb[0].mxu0
      %v375 = vpop.f32.mrb[0].mxu0
      %376 = vdwg.mxu0
      %377 = vmatprep.subr.bf16.mxu0 0
      %378 = vmatpush1.bf16.msra.mxu0 %v334
      %379 = vmatprep.subr.bf16.mxu0 0
      %380 = vmatpush1.bf16.msra.mxu0 0
      %381 = vmatprep.subr.bf16.mxu0 0
      %382 = vmatpush1.bf16.msra.mxu0 0
      %383 = vmatprep.subr.bf16.mxu0 0
      %384 = vmatpush1.bf16.msra.mxu0 0
      %385 = vmatprep.subr.bf16.mxu0 0
      %386 = vmatpush1.bf16.msra.mxu0 0
      %387 = vmatprep.subr.bf16.mxu0 0
      %388 = vmatpush1.bf16.msra.mxu0 0
      %389 = vmatprep.subr.bf16.mxu0 0
      %390 = vmatpush1.bf16.msra.mxu0 0
      %391 = vmatprep.subr.bf16.mxu0 0
      %392 = vmatpush1.bf16.msra.mxu0 0
      %393 = vmatprep.subr.bf16.mxu0 0
      %394 = vmatpush1.bf16.msra.mxu0 0
      %395 = vmatprep.subr.bf16.mxu0 0
      %396 = vmatpush1.bf16.msra.mxu0 0
      %397 = vmatprep.subr.bf16.mxu0 0
      %398 = vmatpush1.bf16.msra.mxu0 0
      %399 = vmatprep.subr.bf16.mxu0 0
      %400 = vmatpush1.bf16.msra.mxu0 0
      %401 = vmatprep.subr.bf16.mxu0 0
      %402 = vmatpush1.bf16.msra.mxu0 0
      %403 = vmatprep.subr.bf16.mxu0 0
      %404 = vmatpush1.bf16.msra.mxu0 0
      %405 = vmatprep.subr.bf16.mxu0 0
      %406 = vmatpush1.bf16.msra.mxu0 0
      %407 = vmatprep.subr.bf16.mxu0 0
      %408 = vmatpush1.bf16.msra.mxu0 0
      %409 = vmatprep.mubr.bf16.mxu0 0
      %410 = vmatmul.mubr.bf16.gmra.mrb[0].mxu0 %v325
      %v411 = vpop.f32.mrb[0].mxu0
      %v412 = vadd.f32 %v319, %v411
      %v413 = vpop.f32.mrb[0].mxu0
      %v414 = vpop.f32.mrb[0].mxu0
      %v415 = vpop.f32.mrb[0].mxu0
      %416 = vdwg.mxu0
      %s417 = scalar_lea.vmem %s1, 8
      %v418 = vld [vmem:[%s417] sm:$0xf]
      %419 = vrot.lane.b32.xlu0 %v211, 126
      %v420 = vpop.permute.xlu0 %419
      %421 = vrot.lane.b32.xlu0 %v219, 126
      %v422 = vpop.permute.xlu0 %421
      %423 = vrot.lane.b32.xlu0 %v218, 126
      %v424 = vpop.permute.xlu0 %423
      %vm425 = vcmask 1031168
      %v426 = vsel %vm425, %v420, %v422
      %v427 = vsel %vm425, %v422, %v424
      %v429 = vsel %vm229, %v418, 0
      %v432 = vsel %vm233, %v426, 0
      %v435 = vsel %vm233, %v427, 0
      %v438 = vsel %vm233, %v424, 0
      %440 = vmatprep.subr.bf16.mxu0 %v435
      %441 = vmatpush1.bf16.msra.mxu0 %v432
      %442 = vmatprep.subr.bf16.mxu0 0
      %443 = vmatpush1.bf16.msra.mxu0 0
      %444 = vmatprep.subr.bf16.mxu0 0
      %445 = vmatpush1.bf16.msra.mxu0 0
      %446 = vmatprep.subr.bf16.mxu0 0
      %447 = vmatpush1.bf16.msra.mxu0 0
      %448 = vmatprep.subr.bf16.mxu0 0
      %449 = vmatpush1.bf16.msra.mxu0 0
      %450 = vmatprep.subr.bf16.mxu0 0
      %451 = vmatpush1.bf16.msra.mxu0 0
      %452 = vmatprep.subr.bf16.mxu0 0
      %453 = vmatpush1.bf16.msra.mxu0 0
      %454 = vmatprep.subr.bf16.mxu0 0
      %455 = vmatpush1.bf16.msra.mxu0 0
      %456 = vmatprep.subr.bf16.mxu0 0
      %457 = vmatpush1.bf16.msra.mxu0 0
      %458 = vmatprep.subr.bf16.mxu0 0
      %459 = vmatpush1.bf16.msra.mxu0 0
      %460 = vmatprep.subr.bf16.mxu0 0
      %461 = vmatpush1.bf16.msra.mxu0 0
      %462 = vmatprep.subr.bf16.mxu0 0
      %463 = vmatpush1.bf16.msra.mxu0 0
      %464 = vmatprep.subr.bf16.mxu0 0
      %465 = vmatpush1.bf16.msra.mxu0 0
      %466 = vmatprep.subr.bf16.mxu0 0
      %467 = vmatpush1.bf16.msra.mxu0 0
      %468 = vmatprep.subr.bf16.mxu0 0
      %469 = vmatpush1.bf16.msra.mxu0 0
      %470 = vmatprep.subr.bf16.mxu0 0
      %471 = vmatpush1.bf16.msra.mxu0 0
      %472 = vmatprep.mubr.bf16.mxu0 0
      %473 = vmatmul.mubr.bf16.gmra.mrb[0].mxu0 %v429
      %v474 = vpop.f32.mrb[0].mxu0
      %v475 = vadd.f32 0.0, %v474
      %v476 = vpop.f32.mrb[0].mxu0
      %v477 = vadd.f32 0.0, %v476
      %v478 = vpop.f32.mrb[0].mxu0
      %v479 = vpop.f32.mrb[0].mxu0
      %480 = vdwg.mxu0
      %481 = vmatprep.subr.bf16.mxu0 0
      %482 = vmatpush1.bf16.msra.mxu0 %v438
      %483 = vmatprep.subr.bf16.mxu0 0
      %484 = vmatpush1.bf16.msra.mxu0 0
      %485 = vmatprep.subr.bf16.mxu0 0
      %486 = vmatpush1.bf16.msra.mxu0 0
      %487 = vmatprep.subr.bf16.mxu0 0
      %488 = vmatpush1.bf16.msra.mxu0 0
      %489 = vmatprep.subr.bf16.mxu0 0
      %490 = vmatpush1.bf16.msra.mxu0 0
      %491 = vmatprep.subr.bf16.mxu0 0
      %492 = vmatpush1.bf16.msra.mxu0 0
      %493 = vmatprep.subr.bf16.mxu0 0
      %494 = vmatpush1.bf16.msra.mxu0 0
      %495 = vmatprep.subr.bf16.mxu0 0
      %496 = vmatpush1.bf16.msra.mxu0 0
      %497 = vmatprep.subr.bf16.mxu0 0
      %498 = vmatpush1.bf16.msra.mxu0 0
      %499 = vmatprep.subr.bf16.mxu0 0
      %500 = vmatpush1.bf16.msra.mxu0 0
      %501 = vmatprep.subr.bf16.mxu0 0
      %502 = vmatpush1.bf16.msra.mxu0 0
      %503 = vmatprep.subr.bf16.mxu0 0
      %504 = vmatpush1.bf16.msra.mxu0 0
      %505 = vmatprep.subr.bf16.mxu0 0
      %506 = vmatpush1.bf16.msra.mxu0 0
      %507 = vmatprep.subr.bf16.mxu0 0
      %508 = vmatpush1.bf16.msra.mxu0 0
      %509 = vmatprep.subr.bf16.mxu0 0
      %510 = vmatpush1.bf16.msra.mxu0 0
      %511 = vmatprep.subr.bf16.mxu0 0
      %512 = vmatpush1.bf16.msra.mxu0 0
      %513 = vmatprep.mubr.bf16.mxu0 0
      %514 = vmatmul.mubr.bf16.gmra.mrb[0].mxu0 %v429
      %v515 = vpop.f32.mrb[0].mxu0
      %v516 = vadd.f32 0.0, %v515
      %v517 = vpop.f32.mrb[0].mxu0
      %v518 = vpop.f32.mrb[0].mxu0
      %v519 = vpop.f32.mrb[0].mxu0
      %520 = vdwg.mxu0
      %v521 = vadd.f32 %v371, %v475
      %v522 = vadd.f32 %v373, %v477
      %v523 = vadd.f32 %v412, %v516
      %s524 = scalar_lea.vmem %s1, 12
      %v525 = vld [vmem:[%s524] sm:$0xf]
      %526 = vrot.lane.b32.xlu0 %v211, 110
      %v527 = vpop.permute.xlu0 %526
      %528 = vrot.lane.b32.xlu0 %v219, 110
      %v529 = vpop.permute.xlu0 %528
      %530 = vrot.lane.b32.xlu0 %v218, 110
      %v531 = vpop.permute.xlu0 %530
      %vm532 = vcmask 900096
      %v533 = vsel %vm532, %v527, %v529
      %v534 = vsel %vm532, %v529, %v531
      %v536 = vsel %vm229, %v525, 0
      %v539 = vsel %vm233, %v533, 0
      %v542 = vsel %vm233, %v534, 0
      %v545 = vsel %vm233, %v531, 0
      %547 = vmatprep.subr.bf16.mxu0 %v542
      %548 = vmatpush1.bf16.msra.mxu0 %v539
      %549 = vmatprep.subr.bf16.mxu0 0
      %550 = vmatpush1.bf16.msra.mxu0 0
      %551 = vmatprep.subr.bf16.mxu0 0
      %552 = vmatpush1.bf16.msra.mxu0 0
      %553 = vmatprep.subr.bf16.mxu0 0
      %554 = vmatpush1.bf16.msra.mxu0 0
      %555 = vmatprep.subr.bf16.mxu0 0
      %556 = vmatpush1.bf16.msra.mxu0 0
      %557 = vmatprep.subr.bf16.mxu0 0
      %558 = vmatpush1.bf16.msra.mxu0 0
      %559 = vmatprep.subr.bf16.mxu0 0
      %560 = vmatpush1.bf16.msra.mxu0 0
      %561 = vmatprep.subr.bf16.mxu0 0
      %562 = vmatpush1.bf16.msra.mxu0 0
      %563 = vmatprep.subr.bf16.mxu0 0
      %564 = vmatpush1.bf16.msra.mxu0 0
      %565 = vmatprep.subr.bf16.mxu0 0
      %566 = vmatpush1.bf16.msra.mxu0 0
      %567 = vmatprep.subr.bf16.mxu0 0
      %568 = vmatpush1.bf16.msra.mxu0 0
      %569 = vmatprep.subr.bf16.mxu0 0
      %570 = vmatpush1.bf16.msra.mxu0 0
      %571 = vmatprep.subr.bf16.mxu0 0
      %572 = vmatpush1.bf16.msra.mxu0 0
      %573 = vmatprep.subr.bf16.mxu0 0
      %574 = vmatpush1.bf16.msra.mxu0 0
      %575 = vmatprep.subr.bf16.mxu0 0
      %576 = vmatpush1.bf16.msra.mxu0 0
      %577 = vmatprep.subr.bf16.mxu0 0
      %578 = vmatpush1.bf16.msra.mxu0 0
      %579 = vmatprep.mubr.bf16.mxu0 0
      %580 = vmatmul.mubr.bf16.gmra.mrb[0].mxu0 %v536
      %v581 = vpop.f32.mrb[0].mxu0
      %v582 = vadd.f32 0.0, %v581
      %v583 = vpop.f32.mrb[0].mxu0
      %v584 = vadd.f32 0.0, %v583
      %v585 = vpop.f32.mrb[0].mxu0
      %v586 = vpop.f32.mrb[0].mxu0
      %587 = vdwg.mxu0
      %588 = vmatprep.subr.bf16.mxu0 0
      %589 = vmatpush1.bf16.msra.mxu0 %v545
      %590 = vmatprep.subr.bf16.mxu0 0
      %591 = vmatpush1.bf16.msra.mxu0 0
      %592 = vmatprep.subr.bf16.mxu0 0
      %593 = vmatpush1.bf16.msra.mxu0 0
      %594 = vmatprep.subr.bf16.mxu0 0
      %595 = vmatpush1.bf16.msra.mxu0 0
      %596 = vmatprep.subr.bf16.mxu0 0
      %597 = vmatpush1.bf16.msra.mxu0 0
      %598 = vmatprep.subr.bf16.mxu0 0
      %599 = vmatpush1.bf16.msra.mxu0 0
      %600 = vmatprep.subr.bf16.mxu0 0
      %601 = vmatpush1.bf16.msra.mxu0 0
      %602 = vmatprep.subr.bf16.mxu0 0
      %603 = vmatpush1.bf16.msra.mxu0 0
      %604 = vmatprep.subr.bf16.mxu0 0
      %605 = vmatpush1.bf16.msra.mxu0 0
      %606 = vmatprep.subr.bf16.mxu0 0
      %607 = vmatpush1.bf16.msra.mxu0 0
      %608 = vmatprep.subr.bf16.mxu0 0
      %609 = vmatpush1.bf16.msra.mxu0 0
      %610 = vmatprep.subr.bf16.mxu0 0
      %611 = vmatpush1.bf16.msra.mxu0 0
      %612 = vmatprep.subr.bf16.mxu0 0
      %613 = vmatpush1.bf16.msra.mxu0 0
      %614 = vmatprep.subr.bf16.mxu0 0
      %615 = vmatpush1.bf16.msra.mxu0 0
      %616 = vmatprep.subr.bf16.mxu0 0
      %617 = vmatpush1.bf16.msra.mxu0 0
      %618 = vmatprep.subr.bf16.mxu0 0
      %619 = vmatpush1.bf16.msra.mxu0 0
      %620 = vmatprep.mubr.bf16.mxu0 0
      %621 = vmatmul.mubr.bf16.gmra.mrb[0].mxu0 %v536
      %v622 = vpop.f32.mrb[0].mxu0
      %v623 = vadd.f32 0.0, %v622
      %v624 = vpop.f32.mrb[0].mxu0
      %v625 = vpop.f32.mrb[0].mxu0
      %v626 = vpop.f32.mrb[0].mxu0
      %627 = vdwg.mxu0
      %v628 = vadd.f32 %v521, %v582
      %v629 = vadd.f32 %v522, %v584
      %v630 = vadd.f32 %v523, %v623
      %s631 = scalar_lea.vmem %s1, 16
      %v632 = vld [vmem:[%s631] sm:$0xf]
      %633 = vrot.lane.b32.xlu0 %v211, 109
      %v634 = vpop.permute.xlu0 %633
      %635 = vrot.lane.b32.xlu0 %v219, 109
      %v636 = vpop.permute.xlu0 %635
      %637 = vrot.lane.b32.xlu0 %v218, 109
      %v638 = vpop.permute.xlu0 %637
      %vm639 = vcmask 891904
      %v640 = vsel %vm639, %v634, %v636
      %v641 = vsel %vm639, %v636, %v638
      %v643 = vsel %vm229, %v632, 0
      %v646 = vsel %vm233, %v640, 0
      %v649 = vsel %vm233, %v641, 0
      %v652 = vsel %vm233, %v638, 0
      %654 = vmatprep.subr.bf16.mxu0 %v649
      %655 = vmatpush1.bf16.msra.mxu0 %v646
      %656 = vmatprep.subr.bf16.mxu0 0
      %657 = vmatpush1.bf16.msra.mxu0 0
      %658 = vmatprep.subr.bf16.mxu0 0
      %659 = vmatpush1.bf16.msra.mxu0 0
      %660 = vmatprep.subr.bf16.mxu0 0
      %661 = vmatpush1.bf16.msra.mxu0 0
      %662 = vmatprep.subr.bf16.mxu0 0
      %663 = vmatpush1.bf16.msra.mxu0 0
      %664 = vmatprep.subr.bf16.mxu0 0
      %665 = vmatpush1.bf16.msra.mxu0 0
      %666 = vmatprep.subr.bf16.mxu0 0
      %667 = vmatpush1.bf16.msra.mxu0 0
      %668 = vmatprep.subr.bf16.mxu0 0
      %669 = vmatpush1.bf16.msra.mxu0 0
      %670 = vmatprep.subr.bf16.mxu0 0
      %671 = vmatpush1.bf16.msra.mxu0 0
      %672 = vmatprep.subr.bf16.mxu0 0
      %673 = vmatpush1.bf16.msra.mxu0 0
      %674 = vmatprep.subr.bf16.mxu0 0
      %675 = vmatpush1.bf16.msra.mxu0 0
      %676 = vmatprep.subr.bf16.mxu0 0
      %677 = vmatpush1.bf16.msra.mxu0 0
      %678 = vmatprep.subr.bf16.mxu0 0
      %679 = vmatpush1.bf16.msra.mxu0 0
      %680 = vmatprep.subr.bf16.mxu0 0
      %681 = vmatpush1.bf16.msra.mxu0 0
      %682 = vmatprep.subr.bf16.mxu0 0
      %683 = vmatpush1.bf16.msra.mxu0 0
      %684 = vmatprep.subr.bf16.mxu0 0
      %685 = vmatpush1.bf16.msra.mxu0 0
      %686 = vmatprep.mubr.bf16.mxu0 0
      %687 = vmatmul.mubr.bf16.gmra.mrb[0].mxu0 %v643
      %v688 = vpop.f32.mrb[0].mxu0
      %v689 = vadd.f32 0.0, %v688
      %v690 = vpop.f32.mrb[0].mxu0
      %v691 = vadd.f32 0.0, %v690
      %v692 = vpop.f32.mrb[0].mxu0
      %v693 = vpop.f32.mrb[0].mxu0
      %694 = vdwg.mxu0
      %695 = vmatprep.subr.bf16.mxu0 0
      %696 = vmatpush1.bf16.msra.mxu0 %v652
      %697 = vmatprep.subr.bf16.mxu0 0
      %698 = vmatpush1.bf16.msra.mxu0 0
      %699 = vmatprep.subr.bf16.mxu0 0
      %700 = vmatpush1.bf16.msra.mxu0 0
      %701 = vmatprep.subr.bf16.mxu0 0
      %702 = vmatpush1.bf16.msra.mxu0 0
      %703 = vmatprep.subr.bf16.mxu0 0
      %704 = vmatpush1.bf16.msra.mxu0 0
      %705 = vmatprep.subr.bf16.mxu0 0
      %706 = vmatpush1.bf16.msra.mxu0 0
      %707 = vmatprep.subr.bf16.mxu0 0
      %708 = vmatpush1.bf16.msra.mxu0 0
      %709 = vmatprep.subr.bf16.mxu0 0
      %710 = vmatpush1.bf16.msra.mxu0 0
      %711 = vmatprep.subr.bf16.mxu0 0
      %712 = vmatpush1.bf16.msra.mxu0 0
      %713 = vmatprep.subr.bf16.mxu0 0
      %714 = vmatpush1.bf16.msra.mxu0 0
      %715 = vmatprep.subr.bf16.mxu0 0
      %716 = vmatpush1.bf16.msra.mxu0 0
      %717 = vmatprep.subr.bf16.mxu0 0
      %718 = vmatpush1.bf16.msra.mxu0 0
      %719 = vmatprep.subr.bf16.mxu0 0
      %720 = vmatpush1.bf16.msra.mxu0 0
      %721 = vmatprep.subr.bf16.mxu0 0
      %722 = vmatpush1.bf16.msra.mxu0 0
      %723 = vmatprep.subr.bf16.mxu0 0
      %724 = vmatpush1.bf16.msra.mxu0 0
      %725 = vmatprep.subr.bf16.mxu0 0
      %726 = vmatpush1.bf16.msra.mxu0 0
      %727 = vmatprep.mubr.bf16.mxu0 0
      %728 = vmatmul.mubr.bf16.gmra.mrb[0].mxu0 %v643
      %v729 = vpop.f32.mrb[0].mxu0
      %v730 = vadd.f32 0.0, %v729
      %v731 = vpop.f32.mrb[0].mxu0
      %v732 = vpop.f32.mrb[0].mxu0
      %v733 = vpop.f32.mrb[0].mxu0
      %734 = vdwg.mxu0
      %v735 = vadd.f32 %v628, %v689
      %v736 = vadd.f32 %v629, %v691
      %v737 = vadd.f32 %v630, %v730
      %s738 = scalar_lea.vmem %s1, 20
      %v739 = vld [vmem:[%s738] sm:$0xf]
      %740 = vrot.lane.b32.xlu0 %v211, 108
      %v741 = vpop.permute.xlu0 %740
      %742 = vrot.lane.b32.xlu0 %v219, 108
      %v743 = vpop.permute.xlu0 %742
      %744 = vrot.lane.b32.xlu0 %v218, 108
      %v745 = vpop.permute.xlu0 %744
      %vm746 = vcmask 883712
      %v747 = vsel %vm746, %v741, %v743
      %v748 = vsel %vm746, %v743, %v745
      %v750 = vsel %vm229, %v739, 0
      %v753 = vsel %vm233, %v747, 0
      %v756 = vsel %vm233, %v748, 0
      %v759 = vsel %vm233, %v745, 0
      %761 = vmatprep.subr.bf16.mxu0 %v756
      %762 = vmatpush1.bf16.msra.mxu0 %v753
      %763 = vmatprep.subr.bf16.mxu0 0
      %764 = vmatpush1.bf16.msra.mxu0 0
      %765 = vmatprep.subr.bf16.mxu0 0
      %766 = vmatpush1.bf16.msra.mxu0 0
      %767 = vmatprep.subr.bf16.mxu0 0
      %768 = vmatpush1.bf16.msra.mxu0 0
      %769 = vmatprep.subr.bf16.mxu0 0
      %770 = vmatpush1.bf16.msra.mxu0 0
      %771 = vmatprep.subr.bf16.mxu0 0
      %772 = vmatpush1.bf16.msra.mxu0 0
      %773 = vmatprep.subr.bf16.mxu0 0
      %774 = vmatpush1.bf16.msra.mxu0 0
      %775 = vmatprep.subr.bf16.mxu0 0
      %776 = vmatpush1.bf16.msra.mxu0 0
      %777 = vmatprep.subr.bf16.mxu0 0
      %778 = vmatpush1.bf16.msra.mxu0 0
      %779 = vmatprep.subr.bf16.mxu0 0
      %780 = vmatpush1.bf16.msra.mxu0 0
      %781 = vmatprep.subr.bf16.mxu0 0
      %782 = vmatpush1.bf16.msra.mxu0 0
      %783 = vmatprep.subr.bf16.mxu0 0
      %784 = vmatpush1.bf16.msra.mxu0 0
      %785 = vmatprep.subr.bf16.mxu0 0
      %786 = vmatpush1.bf16.msra.mxu0 0
      %787 = vmatprep.subr.bf16.mxu0 0
      %788 = vmatpush1.bf16.msra.mxu0 0
      %789 = vmatprep.subr.bf16.mxu0 0
      %790 = vmatpush1.bf16.msra.mxu0 0
      %791 = vmatprep.subr.bf16.mxu0 0
      %792 = vmatpush1.bf16.msra.mxu0 0
      %793 = vmatprep.mubr.bf16.mxu0 0
      %794 = vmatmul.mubr.bf16.gmra.mrb[0].mxu0 %v750
      %v795 = vpop.f32.mrb[0].mxu0
      %v796 = vadd.f32 0.0, %v795
      %v797 = vpop.f32.mrb[0].mxu0
      %v798 = vadd.f32 0.0, %v797
      %v799 = vpop.f32.mrb[0].mxu0
      %v800 = vpop.f32.mrb[0].mxu0
      %801 = vdwg.mxu0
      %802 = vmatprep.subr.bf16.mxu0 0
      %803 = vmatpush1.bf16.msra.mxu0 %v759
      %804 = vmatprep.subr.bf16.mxu0 0
      %805 = vmatpush1.bf16.msra.mxu0 0
      %806 = vmatprep.subr.bf16.mxu0 0
      %807 = vmatpush1.bf16.msra.mxu0 0
      %808 = vmatprep.subr.bf16.mxu0 0
      %809 = vmatpush1.bf16.msra.mxu0 0
      %810 = vmatprep.subr.bf16.mxu0 0
      %811 = vmatpush1.bf16.msra.mxu0 0
      %812 = vmatprep.subr.bf16.mxu0 0
      %813 = vmatpush1.bf16.msra.mxu0 0
      %814 = vmatprep.subr.bf16.mxu0 0
      %815 = vmatpush1.bf16.msra.mxu0 0
      %816 = vmatprep.subr.bf16.mxu0 0
      %817 = vmatpush1.bf16.msra.mxu0 0
      %818 = vmatprep.subr.bf16.mxu0 0
      %819 = vmatpush1.bf16.msra.mxu0 0
      %820 = vmatprep.subr.bf16.mxu0 0
      %821 = vmatpush1.bf16.msra.mxu0 0
      %822 = vmatprep.subr.bf16.mxu0 0
      %823 = vmatpush1.bf16.msra.mxu0 0
      %824 = vmatprep.subr.bf16.mxu0 0
      %825 = vmatpush1.bf16.msra.mxu0 0
      %826 = vmatprep.subr.bf16.mxu0 0
      %827 = vmatpush1.bf16.msra.mxu0 0
      %828 = vmatprep.subr.bf16.mxu0 0
      %829 = vmatpush1.bf16.msra.mxu0 0
      %830 = vmatprep.subr.bf16.mxu0 0
      %831 = vmatpush1.bf16.msra.mxu0 0
      %832 = vmatprep.subr.bf16.mxu0 0
      %833 = vmatpush1.bf16.msra.mxu0 0
      %834 = vmatprep.mubr.bf16.mxu0 0
      %835 = vmatmul.mubr.bf16.gmra.mrb[0].mxu0 %v750
      %v836 = vpop.f32.mrb[0].mxu0
      %v837 = vadd.f32 0.0, %v836
      %v838 = vpop.f32.mrb[0].mxu0
      %v839 = vpop.f32.mrb[0].mxu0
      %v840 = vpop.f32.mrb[0].mxu0
      %841 = vdwg.mxu0
      %v842 = vadd.f32 %v735, %v796
      %v843 = vadd.f32 %v736, %v798
      %v844 = vadd.f32 %v737, %v837
      %s845 = scalar_lea.vmem %s1, 24
      %v846 = vld [vmem:[%s845] sm:$0xf]
      %847 = vrot.lane.b32.xlu0 %v211, 92
      %v848 = vpop.permute.xlu0 %847
      %849 = vrot.lane.b32.xlu0 %v219, 92
      %v850 = vpop.permute.xlu0 %849
      %851 = vrot.lane.b32.xlu0 %v218, 92
      %v852 = vpop.permute.xlu0 %851
      %vm853 = vcmask 752640
      %v854 = vsel %vm853, %v848, %v850
      %v855 = vsel %vm853, %v850, %v852
      %v857 = vsel %vm229, %v846, 0
      %v860 = vsel %vm233, %v854, 0
      %v863 = vsel %vm233, %v855, 0
      %v866 = vsel %vm233, %v852, 0
      %868 = vmatprep.subr.bf16.mxu0 %v863
      %869 = vmatpush1.bf16.msra.mxu0 %v860
      %870 = vmatprep.subr.bf16.mxu0 0
      %871 = vmatpush1.bf16.msra.mxu0 0
      %872 = vmatprep.subr.bf16.mxu0 0
      %873 = vmatpush1.bf16.msra.mxu0 0
      %874 = vmatprep.subr.bf16.mxu0 0
      %875 = vmatpush1.bf16.msra.mxu0 0
      %876 = vmatprep.subr.bf16.mxu0 0
      %877 = vmatpush1.bf16.msra.mxu0 0
      %878 = vmatprep.subr.bf16.mxu0 0
      %879 = vmatpush1.bf16.msra.mxu0 0
      %880 = vmatprep.subr.bf16.mxu0 0
      %881 = vmatpush1.bf16.msra.mxu0 0
      %882 = vmatprep.subr.bf16.mxu0 0
      %883 = vmatpush1.bf16.msra.mxu0 0
      %884 = vmatprep.subr.bf16.mxu0 0
      %885 = vmatpush1.bf16.msra.mxu0 0
      %886 = vmatprep.subr.bf16.mxu0 0
      %887 = vmatpush1.bf16.msra.mxu0 0
      %888 = vmatprep.subr.bf16.mxu0 0
      %889 = vmatpush1.bf16.msra.mxu0 0
      %890 = vmatprep.subr.bf16.mxu0 0
      %891 = vmatpush1.bf16.msra.mxu0 0
      %892 = vmatprep.subr.bf16.mxu0 0
      %893 = vmatpush1.bf16.msra.mxu0 0
      %894 = vmatprep.subr.bf16.mxu0 0
      %895 = vmatpush1.bf16.msra.mxu0 0
      %896 = vmatprep.subr.bf16.mxu0 0
      %897 = vmatpush1.bf16.msra.mxu0 0
      %898 = vmatprep.subr.bf16.mxu0 0
      %899 = vmatpush1.bf16.msra.mxu0 0
      %900 = vmatprep.mubr.bf16.mxu0 0
      %901 = vmatmul.mubr.bf16.gmra.mrb[0].mxu0 %v857
      %v902 = vpop.f32.mrb[0].mxu0
      %v903 = vadd.f32 0.0, %v902
      %v904 = vpop.f32.mrb[0].mxu0
      %v905 = vadd.f32 0.0, %v904
      %v906 = vpop.f32.mrb[0].mxu0
      %v907 = vpop.f32.mrb[0].mxu0
      %908 = vdwg.mxu0
      %909 = vmatprep.subr.bf16.mxu0 0
      %910 = vmatpush1.bf16.msra.mxu0 %v866
      %911 = vmatprep.subr.bf16.mxu0 0
      %912 = vmatpush1.bf16.msra.mxu0 0
      %913 = vmatprep.subr.bf16.mxu0 0
      %914 = vmatpush1.bf16.msra.mxu0 0
      %915 = vmatprep.subr.bf16.mxu0 0
      %916 = vmatpush1.bf16.msra.mxu0 0
      %917 = vmatprep.subr.bf16.mxu0 0
      %918 = vmatpush1.bf16.msra.mxu0 0
      %919 = vmatprep.subr.bf16.mxu0 0
      %920 = vmatpush1.bf16.msra.mxu0 0
      %921 = vmatprep.subr.bf16.mxu0 0
      %922 = vmatpush1.bf16.msra.mxu0 0
      %923 = vmatprep.subr.bf16.mxu0 0
      %924 = vmatpush1.bf16.msra.mxu0 0
      %925 = vmatprep.subr.bf16.mxu0 0
      %926 = vmatpush1.bf16.msra.mxu0 0
      %927 = vmatprep.subr.bf16.mxu0 0
      %928 = vmatpush1.bf16.msra.mxu0 0
      %929 = vmatprep.subr.bf16.mxu0 0
      %930 = vmatpush1.bf16.msra.mxu0 0
      %931 = vmatprep.subr.bf16.mxu0 0
      %932 = vmatpush1.bf16.msra.mxu0 0
      %933 = vmatprep.subr.bf16.mxu0 0
      %934 = vmatpush1.bf16.msra.mxu0 0
      %935 = vmatprep.subr.bf16.mxu0 0
      %936 = vmatpush1.bf16.msra.mxu0 0
      %937 = vmatprep.subr.bf16.mxu0 0
      %938 = vmatpush1.bf16.msra.mxu0 0
      %939 = vmatprep.subr.bf16.mxu0 0
      %940 = vmatpush1.bf16.msra.mxu0 0
      %941 = vmatprep.mubr.bf16.mxu0 0
      %942 = vmatmul.mubr.bf16.gmra.mrb[0].mxu0 %v857
      %v943 = vpop.f32.mrb[0].mxu0
      %v944 = vadd.f32 0.0, %v943
      %v945 = vpop.f32.mrb[0].mxu0
      %v946 = vpop.f32.mrb[0].mxu0
      %v947 = vpop.f32.mrb[0].mxu0
      %948 = vdwg.mxu0
      %v949 = vadd.f32 %v842, %v903
      %v950 = vadd.f32 %v843, %v905
      %v951 = vadd.f32 %v844, %v944
      %s952 = scalar_lea.vmem %s1, 28
      %v953 = vld [vmem:[%s952] sm:$0xf]
      %954 = vrot.lane.b32.xlu0 %v211, 91
      %v955 = vpop.permute.xlu0 %954
      %956 = vrot.lane.b32.xlu0 %v219, 91
      %v957 = vpop.permute.xlu0 %956
      %958 = vrot.lane.b32.xlu0 %v218, 91
      %v959 = vpop.permute.xlu0 %958
      %vm960 = vcmask 744448
      %v961 = vsel %vm960, %v955, %v957
      %v962 = vsel %vm960, %v957, %v959
      %v964 = vsel %vm229, %v953, 0
      %v967 = vsel %vm233, %v961, 0
      %v970 = vsel %vm233, %v962, 0
      %v973 = vsel %vm233, %v959, 0
      %975 = vmatprep.subr.bf16.mxu0 %v970
      %976 = vmatpush1.bf16.msra.mxu0 %v967
      %977 = vmatprep.subr.bf16.mxu0 0
      %978 = vmatpush1.bf16.msra.mxu0 0
      %979 = vmatprep.subr.bf16.mxu0 0
      %980 = vmatpush1.bf16.msra.mxu0 0
      %981 = vmatprep.subr.bf16.mxu0 0
      %982 = vmatpush1.bf16.msra.mxu0 0
      %983 = vmatprep.subr.bf16.mxu0 0
      %984 = vmatpush1.bf16.msra.mxu0 0
      %985 = vmatprep.subr.bf16.mxu0 0
      %986 = vmatpush1.bf16.msra.mxu0 0
      %987 = vmatprep.subr.bf16.mxu0 0
      %988 = vmatpush1.bf16.msra.mxu0 0
      %989 = vmatprep.subr.bf16.mxu0 0
      %990 = vmatpush1.bf16.msra.mxu0 0
      %991 = vmatprep.subr.bf16.mxu0 0
      %992 = vmatpush1.bf16.msra.mxu0 0
      %993 = vmatprep.subr.bf16.mxu0 0
      %994 = vmatpush1.bf16.msra.mxu0 0
      %995 = vmatprep.subr.bf16.mxu0 0
      %996 = vmatpush1.bf16.msra.mxu0 0
      %997 = vmatprep.subr.bf16.mxu0 0
      %998 = vmatpush1.bf16.msra.mxu0 0
      %999 = vmatprep.subr.bf16.mxu0 0
      %1000 = vmatpush1.bf16.msra.mxu0 0
      %1001 = vmatprep.subr.bf16.mxu0 0
      %1002 = vmatpush1.bf16.msra.mxu0 0
      %1003 = vmatprep.subr.bf16.mxu0 0
      %1004 = vmatpush1.bf16.msra.mxu0 0
      %1005 = vmatprep.subr.bf16.mxu0 0
      %1006 = vmatpush1.bf16.msra.mxu0 0
      %1007 = vmatprep.mubr.bf16.mxu0 0
      %1008 = vmatmul.mubr.bf16.gmra.mrb[0].mxu0 %v964
      %v1009 = vpop.f32.mrb[0].mxu0
      %v1010 = vadd.f32 0.0, %v1009
      %v1011 = vpop.f32.mrb[0].mxu0
      %v1012 = vadd.f32 0.0, %v1011
      %v1013 = vpop.f32.mrb[0].mxu0
      %v1014 = vpop.f32.mrb[0].mxu0
      %1015 = vdwg.mxu0
      %1016 = vmatprep.subr.bf16.mxu0 0
      %1017 = vmatpush1.bf16.msra.mxu0 %v973
      %1018 = vmatprep.subr.bf16.mxu0 0
      %1019 = vmatpush1.bf16.msra.mxu0 0
      %1020 = vmatprep.subr.bf16.mxu0 0
      %1021 = vmatpush1.bf16.msra.mxu0 0
      %1022 = vmatprep.subr.bf16.mxu0 0
      %1023 = vmatpush1.bf16.msra.mxu0 0
      %1024 = vmatprep.subr.bf16.mxu0 0
      %1025 = vmatpush1.bf16.msra.mxu0 0
      %1026 = vmatprep.subr.bf16.mxu0 0
      %1027 = vmatpush1.bf16.msra.mxu0 0
      %1028 = vmatprep.subr.bf16.mxu0 0
      %1029 = vmatpush1.bf16.msra.mxu0 0
      %1030 = vmatprep.subr.bf16.mxu0 0
      %1031 = vmatpush1.bf16.msra.mxu0 0
      %1032 = vmatprep.subr.bf16.mxu0 0
      %1033 = vmatpush1.bf16.msra.mxu0 0
      %1034 = vmatprep.subr.bf16.mxu0 0
      %1035 = vmatpush1.bf16.msra.mxu0 0
      %1036 = vmatprep.subr.bf16.mxu0 0
      %1037 = vmatpush1.bf16.msra.mxu0 0
      %1038 = vmatprep.subr.bf16.mxu0 0
      %1039 = vmatpush1.bf16.msra.mxu0 0
      %1040 = vmatprep.subr.bf16.mxu0 0
      %1041 = vmatpush1.bf16.msra.mxu0 0
      %1042 = vmatprep.subr.bf16.mxu0 0
      %1043 = vmatpush1.bf16.msra.mxu0 0
      %1044 = vmatprep.subr.bf16.mxu0 0
      %1045 = vmatpush1.bf16.msra.mxu0 0
      %1046 = vmatprep.subr.bf16.mxu0 0
      %1047 = vmatpush1.bf16.msra.mxu0 0
      %1048 = vmatprep.mubr.bf16.mxu0 0
      %1049 = vmatmul.mubr.bf16.gmra.mrb[0].mxu0 %v964
      %v1050 = vpop.f32.mrb[0].mxu0
      %v1051 = vadd.f32 0.0, %v1050
      %v1052 = vpop.f32.mrb[0].mxu0
      %v1053 = vpop.f32.mrb[0].mxu0
      %v1054 = vpop.f32.mrb[0].mxu0
      %1055 = vdwg.mxu0
      %v1056 = vadd.f32 %v949, %v1010
      %v1057 = vadd.f32 %v950, %v1012
      %v1058 = vadd.f32 %v951, %v1051
      %s1059 = scalar_lea.vmem %s1, 32
      %v1060 = vld [vmem:[%s1059] sm:$0xf]
      %1061 = vrot.lane.b32.xlu0 %v211, 90
      %v1062 = vpop.permute.xlu0 %1061
      %1063 = vrot.lane.b32.xlu0 %v219, 90
      %v1064 = vpop.permute.xlu0 %1063
      %1065 = vrot.lane.b32.xlu0 %v218, 90
      %v1066 = vpop.permute.xlu0 %1065
      %vm1067 = vcmask 736256
      %v1068 = vsel %vm1067, %v1062, %v1064
      %v1069 = vsel %vm1067, %v1064, %v1066
      %v1071 = vsel %vm229, %v1060, 0
      %v1074 = vsel %vm233, %v1068, 0
      %v1077 = vsel %vm233, %v1069, 0
      %v1080 = vsel %vm233, %v1066, 0
      %1082 = vmatprep.subr.bf16.mxu0 %v1077
      %1083 = vmatpush1.bf16.msra.mxu0 %v1074
      %1084 = vmatprep.subr.bf16.mxu0 0
      %1085 = vmatpush1.bf16.msra.mxu0 0
      %1086 = vmatprep.subr.bf16.mxu0 0
      %1087 = vmatpush1.bf16.msra.mxu0 0
      %1088 = vmatprep.subr.bf16.mxu0 0
      %1089 = vmatpush1.bf16.msra.mxu0 0
      %1090 = vmatprep.subr.bf16.mxu0 0
      %1091 = vmatpush1.bf16.msra.mxu0 0
      %1092 = vmatprep.subr.bf16.mxu0 0
      %1093 = vmatpush1.bf16.msra.mxu0 0
      %1094 = vmatprep.subr.bf16.mxu0 0
      %1095 = vmatpush1.bf16.msra.mxu0 0
      %1096 = vmatprep.subr.bf16.mxu0 0
      %1097 = vmatpush1.bf16.msra.mxu0 0
      %1098 = vmatprep.subr.bf16.mxu0 0
      %1099 = vmatpush1.bf16.msra.mxu0 0
      %1100 = vmatprep.subr.bf16.mxu0 0
      %1101 = vmatpush1.bf16.msra.mxu0 0
      %1102 = vmatprep.subr.bf16.mxu0 0
      %1103 = vmatpush1.bf16.msra.mxu0 0
      %1104 = vmatprep.subr.bf16.mxu0 0
      %1105 = vmatpush1.bf16.msra.mxu0 0
      %1106 = vmatprep.subr.bf16.mxu0 0
      %1107 = vmatpush1.bf16.msra.mxu0 0
      %1108 = vmatprep.subr.bf16.mxu0 0
      %1109 = vmatpush1.bf16.msra.mxu0 0
      %1110 = vmatprep.subr.bf16.mxu0 0
      %1111 = vmatpush1.bf16.msra.mxu0 0
      %1112 = vmatprep.subr.bf16.mxu0 0
      %1113 = vmatpush1.bf16.msra.mxu0 0
      %1114 = vmatprep.mubr.bf16.mxu0 0
      %1115 = vmatmul.mubr.bf16.gmra.mrb[0].mxu0 %v1071
      %v1116 = vpop.f32.mrb[0].mxu0
      %v1117 = vadd.f32 0.0, %v1116
      %v1118 = vpop.f32.mrb[0].mxu0
      %v1119 = vadd.f32 0.0, %v1118
      %v1120 = vpop.f32.mrb[0].mxu0
      %v1121 = vpop.f32.mrb[0].mxu0
      %1122 = vdwg.mxu0
      %1123 = vmatprep.subr.bf16.mxu0 0
      %1124 = vmatpush1.bf16.msra.mxu0 %v1080
      %1125 = vmatprep.subr.bf16.mxu0 0
      %1126 = vmatpush1.bf16.msra.mxu0 0
      %1127 = vmatprep.subr.bf16.mxu0 0
      %1128 = vmatpush1.bf16.msra.mxu0 0
      %1129 = vmatprep.subr.bf16.mxu0 0
      %1130 = vmatpush1.bf16.msra.mxu0 0
      %1131 = vmatprep.subr.bf16.mxu0 0
      %1132 = vmatpush1.bf16.msra.mxu0 0
      %1133 = vmatprep.subr.bf16.mxu0 0
      %1134 = vmatpush1.bf16.msra.mxu0 0
      %1135 = vmatprep.subr.bf16.mxu0 0
      %1136 = vmatpush1.bf16.msra.mxu0 0
      %1137 = vmatprep.subr.bf16.mxu0 0
      %1138 = vmatpush1.bf16.msra.mxu0 0
      %1139 = vmatprep.subr.bf16.mxu0 0
      %1140 = vmatpush1.bf16.msra.mxu0 0
      %1141 = vmatprep.subr.bf16.mxu0 0
      %1142 = vmatpush1.bf16.msra.mxu0 0
      %1143 = vmatprep.subr.bf16.mxu0 0
      %1144 = vmatpush1.bf16.msra.mxu0 0
      %1145 = vmatprep.subr.bf16.mxu0 0
      %1146 = vmatpush1.bf16.msra.mxu0 0
      %1147 = vmatprep.subr.bf16.mxu0 0
      %1148 = vmatpush1.bf16.msra.mxu0 0
      %1149 = vmatprep.subr.bf16.mxu0 0
      %1150 = vmatpush1.bf16.msra.mxu0 0
      %1151 = vmatprep.subr.bf16.mxu0 0
      %1152 = vmatpush1.bf16.msra.mxu0 0
      %1153 = vmatprep.subr.bf16.mxu0 0
      %1154 = vmatpush1.bf16.msra.mxu0 0
      %1155 = vmatprep.mubr.bf16.mxu0 0
      %1156 = vmatmul.mubr.bf16.gmra.mrb[0].mxu0 %v1071
      %v1157 = vpop.f32.mrb[0].mxu0
      %v1158 = vadd.f32 0.0, %v1157
      %v1159 = vpop.f32.mrb[0].mxu0
      %v1160 = vpop.f32.mrb[0].mxu0
      %v1161 = vpop.f32.mrb[0].mxu0
      %1162 = vdwg.mxu0
      %v1163 = vadd.f32 %v1056, %v1117
      %v1164 = vadd.f32 %v1057, %v1119
      %v1165 = vadd.f32 %v1058, %v1158
      %v1166 = vld [vmem:[%s2] sm:$0xff]
      %1168 = vset.pattern.permute.xlu0 0
      %1169 = vperm.xlu0 %1168, %v1166
      %v1170 = vpop.permute.xlu0 %1169
      %v1172 = vmul.f32 %v1163, %v1170
      %v1173 = vmul.f32 %v1164, %v1170
      %v1174 = vmul.f32 %v1165, %v1170
      %v1175 = vld [vmem:[%s3] sm:$0xff]
      %1177 = vset.pattern.permute.xlu0 0
      %1178 = vperm.xlu0 %1177, %v1175
      %v1179 = vpop.permute.xlu0 %1178
      %v1181 = vadd.f32 %v1172, %v1179
      %v1182 = vadd.f32 %v1173, %v1179
      %v1183 = vadd.f32 %v1174, %v1179
      %v1184 = vmin.f32 %v1181, 20.0
      %v1185 = vmin.f32 %v1182, 20.0
      %v1186 = vmin.f32 %v1183, 20.0
      %v1187 = vmul.f32 %v1184, 1.442695
      %v1188 = vpow.pop %v1187
      %v1189 = vmul.f32 %v1185, 1.442695
      %v1190 = vpow.pop %v1189
      %v1191 = vmul.f32 %v1186, 1.442695
      %v1192 = vpow.pop %v1191
      %v1193 = vadd.f32 %v1188, 2.0
      %v1194 = vadd.f32 %v1190, 2.0
      %v1195 = vadd.f32 %v1192, 2.0
      %v1196 = vmul.f32 %v1188, %v1193
      %v1197 = vmul.f32 %v1190, %v1194
      %v1198 = vmul.f32 %v1192, %v1195
      %v1199 = vmul.f32 %v1181, %v1196
      %v1200 = vmul.f32 %v1182, %v1197
      %v1201 = vmul.f32 %v1183, %v1198
      %v1202 = vadd.f32 %v1196, 2.0
      %v1203 = vadd.f32 %v1197, 2.0
      %v1204 = vadd.f32 %v1198, 2.0
      %v1205 = vrcp.pop %v1202
      %v1206 = vrcp.pop %v1203
      %v1207 = vrcp.pop %v1204
      %v1208 = vmul.f32 %v1199, %v1205
      %v1209 = vmul.f32 %v1200, %v1206
      %v1210 = vmul.f32 %v1201, %v1207
      %1211 = vst [vmem:[%s197] sm:$0xff] %v1208
      %1212 = vst [vmem:[%s197 + $0x8] sm:$0xff] %v1209
      %vm1213 = vcmask 556032
      %1214 = vst.msk [vmem:[%s197 + $0x10] sm:$0xff] %vm1213, %v1210
      %p1215 = scmp.lt.s32.totalorder %s15, 1
      %s1216 = scalar_select %p1215, %s15, 1
      %s1217 = smul.addr %s1216, 3
      %s1218 = smul.addr %s1217, 8
      %s1219 = scalar_lea.vmem %s4, %s1218
      // Predicated region
      $region37: #{conv_bn_mish.3} parent=35 // pred_check
        %p1220 = pneg %p122
      $region38: #{conv_bn_mish.3} parent=35 // pred_check_branch
        %1222 = sbr.rel (%p1220) target = $region40
      $region39: #{conv_bn_mish.3} parent=35 // pred_region
        _
      $region40: #{conv_bn_mish.3} parent=35 // pred_fallthru
        _
    $region36: #{conv_bn_mish.3} parent=5 // pred_fallthru
      _
    %p1223 = scmp.le.s32.totalorder 2, %s10
    // Predicated region
    $region41: #{conv_bn_mish.3} parent=5 // pred_check
      %p1224 = pneg %p1223
    $region42: #{conv_bn_mish.3} parent=5 // pred_check_branch
      %1226 = sbr.rel (%p1224) target = $region44
    $region43: #{conv_bn_mish.3} parent=5 // pred_region
      %s1227 = ssub.s32 %s10, 2
      // Predicated region
      $region45: #{conv_bn_mish.3} parent=43 // pred_check
        %p1228 = pneg %p128
      $region46: #{conv_bn_mish.3} parent=43 // pred_check_branch
        %1230 = sbr.rel (%p1228) target = $region48
      $region47: #{conv_bn_mish.3} parent=43 // pred_region
        %p1231 = scmp.lt.s32.totalorder %s16, 1
        %s1232 = scalar_select %p1231, %s16, 1
        %s1233 = smul.addr %s1232, 3
        %s1234 = smul.addr %s1233, 8
        %s1235 = scalar_lea.vmem %s4, %s1234
      $region48: #{conv_bn_mish.3} parent=43 // pred_fallthru
        _
    $region44: #{conv_bn_mish.3} parent=5 // pred_fallthru
      _
  $region6: #{conv_bn_mish.3} parent=0 // loop_footer
    %s14 = sadd.s32 1, %s10
  $region7: #{conv_bn_mish.3} parent=0 // loop_footer_branch
    %9 = sbr.rel target = $region3
  $region8: #{conv_bn_mish.3} parent=0 // loop_exit
    _

</llo_original>
